<compile_context>
chip_gen: v6e
topology: v6e:2x2x1
jax: 0.10.0
libtpu: 0.0.40
codegen_flags: <defaults>
</compile_context>

<pallas_src>
import jax
import jax.numpy as jnp
from jax import lax
from jax.experimental import pallas as pl
from jax.experimental.pallas import tpu as pltpu


def _bigru_chunk_kernel(
    lens_ref,   # (B, 1)        int32  valid lengths (resident for whole kernel)
    h0_ref,     # (B, Hp)       f32    initial hidden for this direction
    gi_ref,     # (T, B, 3*Hp)  f32    hoisted input projection for this chunk
    whh_ref,    # (Hp, 3*Hp)    bf16/f32  fused hidden->gate weights (resident over time)
    bhh_ref,    # (1, 3*Hp)     f32    hidden bias, nonzero only for the n gate
    out_ref,    # (T, B, Hp)    f32    per-direction outputs for this chunk
    hfin_ref,   # (B, Hp)       f32    final hidden for this direction
    h_scr,      # (B, Hp)       f32    carried hidden state (VMEM scratch)
):
    d = pl.program_id(0)            # 0 = forward, 1 = backward
    c = pl.program_id(1)            # chunk index in walking order
    C = pl.num_programs(1)
    T = gi_ref.shape[0]
    Hp = out_ref.shape[-1]

    # Start of a direction's time sweep: load the initial hidden state.
    @pl.when(c == 0)
    def _():
        h_scr[...] = h0_ref[...]

    lens = lens_ref[...]            # (B, 1) int32
    whh = whh_ref[...]              # (Hp, 3*Hp)  one load per chunk, reused by T matmuls
    bhh = bhh_ref[...]              # (1, 3*Hp)
    mm_dtype = whh_ref.dtype

    # Chunk index in array (natural time) order: c for fwd, C-1-c for bwd.
    cb = c + d * (C - 1 - 2 * c)

    def step(i, h):
        # Local time inside the chunk: i for fwd, T-1-i for bwd.
        lt = i + d * (T - 1 - 2 * i)
        t = cb * T + lt                               # global timestep

        gi = gi_ref[lt]                               # (B, 3*Hp) f32, biases pre-folded
        gh = jnp.dot(h.astype(mm_dtype), whh,
                     preferred_element_type=jnp.float32) + bhh   # (B, 3*Hp)

        # PyTorch GRU gate order r, z, n; Hp is a multiple of 128 => lane-aligned slabs.
        r = jax.nn.sigmoid(gi[:, :Hp] + gh[:, :Hp])
        z = jax.nn.sigmoid(gi[:, Hp:2 * Hp] + gh[:, Hp:2 * Hp])
        n = jnp.tanh(gi[:, 2 * Hp:] + r * gh[:, 2 * Hp:])
        h_cand = (1.0 - z) * n + z * h                # (B, Hp)

        # pack_padded_sequence semantics: freeze hidden / zero outputs at padding.
        valid = (lens > t).astype(jnp.float32)        # (B, 1)
        h_new = valid * h_cand + (1.0 - valid) * h
        out_ref[lt] = valid * h_new
        return h_new

    h_last = lax.fori_loop(0, T, step, h_scr[...], unroll=True)
    h_scr[...] = h_last

    # Final hidden: single store on the last chunk only.
    @pl.when(c == C - 1)
    def _():
        hfin_ref[...] = h_last


def encoder_rnn_forward(params, input_seq, input_lengths, hidden=None,
                        *, t_chunk=8, matmul_dtype=jnp.bfloat16):
    """Forward pass of EncoderRNN (1-layer bidirectional GRU, dropout=0).

    input_seq:      (S, B)  int32 token ids (time-major, like PyTorch)
    input_lengths:  (B,)    int32 valid lengths
    hidden:         (2, B, H) initial hidden or None
    returns:        outputs (S, B, H) = fwd + bwd outputs, hidden (2, B, H)
    """
    S, B = input_seq.shape
    H = params["w_ih_l0"].shape[1]
    Hp = ((H + 127) // 128) * 128          # per-gate lane padding (500 -> 512, 32 -> 128)
    T = int(t_chunk)
    C = pl.cdiv(S, T)
    S_pad = C * T

    # Glue: embedding gather in plain JAX.
    emb = params["embedding"][input_seq].astype(jnp.float32)            # (S, B, H)

    if hidden is None:
        hidden = jnp.zeros((2, B, H), jnp.float32)
    h0 = jnp.zeros((2, B, Hp), jnp.float32).at[:, :, :H].set(hidden.astype(jnp.float32))

    lens = jnp.asarray(input_lengths, jnp.int32).reshape(B, 1)

    def prep_direction(sfx):
        w_ih = params["w_ih_l0" + sfx].astype(jnp.float32)   # (3H, H)
        w_hh = params["w_hh_l0" + sfx].astype(jnp.float32)   # (3H, H)
        b_ih = params["b_ih_l0" + sfx].astype(jnp.float32)   # (3H,)
        b_hh = params["b_hh_l0" + sfx].astype(jnp.float32)   # (3H,)

        wih_t = jnp.zeros((H, 3, Hp), jnp.float32)           # transposed, gate-padded
        whh_t = jnp.zeros((Hp, 3, Hp), jnp.float32)
        for g in range(3):
            wih_t = wih_t.at[:, g, :H].set(w_ih[g * H:(g + 1) * H, :].T)
            whh_t = whh_t.at[:H, g, :H].set(w_hh[g * H:(g + 1) * H, :].T)

        # Fold b_ih (+ b_hh for the r and z gates) into the hoisted input projection;
        # only the n-gate hidden bias must stay inside the recurrence (multiplied by r).
        gib = jnp.zeros((3, Hp), jnp.float32)
        gib = gib.at[0, :H].set(b_ih[0:H] + b_hh[0:H])
        gib = gib.at[1, :H].set(b_ih[H:2 * H] + b_hh[H:2 * H])
        gib = gib.at[2, :H].set(b_ih[2 * H:3 * H])
        bhn = jnp.zeros((3, Hp), jnp.float32).at[2, :H].set(b_hh[2 * H:3 * H])
        return (wih_t.reshape(H, 3 * Hp), whh_t.reshape(Hp, 3 * Hp),
                gib.reshape(3 * Hp), bhn.reshape(3 * Hp))

    wih_f, whh_f, gib_f, bhn_f = prep_direction("")
    wih_b, whh_b, gib_b, bhn_b = prep_direction("_rev")
    wih = jnp.stack([wih_f, wih_b])                                     # (2, H, 3Hp)
    whh = jnp.stack([whh_f, whh_b]).astype(matmul_dtype)                # (2, Hp, 3Hp)
    gib = jnp.stack([gib_f, gib_b])                                     # (2, 3Hp)
    bhh = jnp.stack([bhn_f, bhn_b]).reshape(2, 1, 3 * Hp)               # (2, 1, 3Hp) f32

    # Hoisted input projection for all timesteps / both directions: one big matmul
    # (M = S*B) instead of 3 tiny per-step matmuls inside the recurrence.
    gi = jnp.einsum("sbh,dhk->dsbk",
                    emb.astype(matmul_dtype), wih.astype(matmul_dtype),
                    preferred_element_type=jnp.float32,
                    precision=jax.lax.Precision.HIGHEST)                # (2, S, B, 3Hp)
    gi = gi + gib[:, None, None, :]
    if S_pad != S:
        gi = jnp.pad(gi, ((0, 0), (0, S_pad - S), (0, 0), (0, 0)))      # padded t: mask=0

    def td_idx(d, c):
        # forward (d=0): chunks 0..C-1 in order; backward (d=1): chunks C-1..0.
        return (d, c + d * (C - 1 - 2 * c), 0, 0)

    dir_out, h_fin = pl.pallas_call(
        _bigru_chunk_kernel,
        out_shape=(
            jax.ShapeDtypeStruct((2, S_pad, B, Hp), jnp.float32),
            jax.ShapeDtypeStruct((2, B, Hp), jnp.float32),
        ),
        grid=(2, C),
        in_specs=[
            pl.BlockSpec((B, 1), lambda d, c: (0, 0)),                  # lens (resident)
            pl.BlockSpec((None, B, Hp), lambda d, c: (d, 0, 0)),        # h0 (per direction)
            pl.BlockSpec((None, T, B, 3 * Hp), td_idx),                 # gi chunk
            pl.BlockSpec((None, Hp, 3 * Hp), lambda d, c: (d, 0, 0)),   # W_hh (resident over time)
            pl.BlockSpec((None, 1, 3 * Hp), lambda d, c: (d, 0, 0)),    # b_hh (n gate only)
        ],
        out_specs=(
            pl.BlockSpec((None, T, B, Hp), td_idx),                     # per-direction outputs
            pl.BlockSpec((None, B, Hp), lambda d, c: (d, 0, 0)),        # final hidden
        ),
        scratch_shapes=[pltpu.VMEM((B, Hp), jnp.float32)],
        compiler_params=pltpu.CompilerParams(
            # direction axis independent (split across v7x's 2 TCs); time is carried.
            dimension_semantics=("parallel", "arbitrary"),
            vmem_limit_bytes=32 * 1024 * 1024,
        ),
    )(lens, h0, gi, whh, bhh)

    outputs = (dir_out[0] + dir_out[1])[:S, :, :H]   # == outputs[:,:, :H] + outputs[:,:, H:]
    return outputs, h_fin[:, :, :H]


def init_params(key, vocab_size, hidden_size):
    H, V = hidden_size, vocab_size
    ks = jax.random.split(key, 9)
    s = 1.0 / jnp.sqrt(H)
    u = lambda k, shape: jax.random.uniform(k, shape, jnp.float32, minval=-s, maxval=s)
    return {
        "embedding": jax.random.normal(ks[0], (V, H), jnp.float32),
        # PyTorch nn.GRU parameter layout: (3H, H) weights, (3H,) biases; gate order r,z,n.
        "w_ih_l0": u(ks[1], (3 * H, H)),
        "w_hh_l0": u(ks[2], (3 * H, H)),
        "b_ih_l0": u(ks[3], (3 * H,)),
        "b_hh_l0": u(ks[4], (3 * H,)),
        "w_ih_l0_rev": u(ks[5], (3 * H, H)),
        "w_hh_l0_rev": u(ks[6], (3 * H, H)),
        "b_ih_l0_rev": u(ks[7], (3 * H,)),
        "b_hh_l0_rev": u(ks[8], (3 * H,)),
    }


# ---------- pure-JAX reference (PyTorch packed bidirectional GRU semantics) ----------

def _gru_cell_ref(x, h, w_ih, w_hh, b_ih, b_hh):
    H = h.shape[-1]
    hp = jax.lax.Precision.HIGHEST
    gi = jnp.dot(x, w_ih.T, precision=hp) + b_ih
    gh = jnp.dot(h, w_hh.T, precision=hp) + b_hh
    r = jax.nn.sigmoid(gi[:, :H] + gh[:, :H])
    z = jax.nn.sigmoid(gi[:, H:2 * H] + gh[:, H:2 * H])
    n = jnp.tanh(gi[:, 2 * H:] + r * gh[:, 2 * H:])
    return (1.0 - z) * n + z * h


def encoder_rnn_reference(params, input_seq, input_lengths, hidden=None):
    S, B = input_seq.shape
    H = params["w_ih_l0"].shape[1]
    emb = params["embedding"][input_seq].astype(jnp.float32)
    lens = jnp.asarray(input_lengths, jnp.int32)
    if hidden is None:
        hidden = jnp.zeros((2, B, H), jnp.float32)

    def run(reverse):
        sfx = "_rev" if reverse else ""
        w_ih, w_hh = params["w_ih_l0" + sfx], params["w_hh_l0" + sfx]
        b_ih, b_hh = params["b_ih_l0" + sfx], params["b_hh_l0" + sfx]
        h = hidden[1 if reverse else 0].astype(jnp.float32)
        out = jnp.zeros((S, B, H), jnp.float32)
        order = range(S - 1, -1, -1) if reverse else range(S)
        for t in order:
            valid = (t < lens).astype(jnp.float32)[:, None]
            h_cand = _gru_cell_ref(emb[t], h, w_ih, w_hh, b_ih, b_hh)
            h = valid * h_cand + (1.0 - valid) * h
            out = out.at[t].set(valid * h)
        return out, h

    out_f, h_f = run(False)
    out_b, h_b = run(True)
    return out_f + out_b, jnp.stack([h_f, h_b])


if __name__ == "__main__":
    S = 10     # sequence length (not a multiple of the chunk size -> exercises padding)
    B = 2      # batch
    H = 32     # hidden_size (module uses 500; small shape for the example)
    V = 64     # vocab size

    key = jax.random.PRNGKey(0)
    k_p, k_tok, k_h = jax.random.split(key, 3)

    params = init_params(k_p, V, H)
    input_seq = jax.random.randint(k_tok, (S, B), 0, V, dtype=jnp.int32)
    input_lengths = jnp.array([10, 6], dtype=jnp.int32)   # descending, as pack_padded_sequence expects

    ref_out, ref_hid = encoder_rnn_reference(params, input_seq, input_lengths)

    # 1) f32-matmul path: tight numerical check of the kernel math against the reference.
    out32, hid32 = encoder_rnn_forward(params, input_seq, input_lengths,
                                       t_chunk=4, matmul_dtype=jnp.float32)
    jax.block_until_ready((out32, hid32))
    assert out32.shape == (S, B, H) and hid32.shape == (2, B, H)
    assert bool(jnp.allclose(out32, ref_out, atol=5e-3, rtol=5e-3)), \
        float(jnp.max(jnp.abs(out32 - ref_out)))
    assert bool(jnp.allclose(hid32, ref_hid, atol=5e-3, rtol=5e-3)), \
        float(jnp.max(jnp.abs(hid32 - ref_hid)))
    # Padded positions (t >= length) are zero, matching pad_packed_sequence.
    assert bool(jnp.allclose(out32[6:, 1], 0.0, atol=1e-6))

    # 1b) same path with a non-zero initial hidden.
    hid0 = 0.1 * jax.random.normal(k_h, (2, B, H), jnp.float32)
    out32b, hid32b = encoder_rnn_forward(params, input_seq, input_lengths, hidden=hid0,
                                         t_chunk=4, matmul_dtype=jnp.float32)
    ref_out_b, ref_hid_b = encoder_rnn_reference(params, input_seq, input_lengths, hid0)
    assert bool(jnp.allclose(out32b, ref_out_b, atol=5e-3, rtol=5e-3))
    assert bool(jnp.allclose(hid32b, ref_hid_b, atol=5e-3, rtol=5e-3))

    # 2) Default bf16-weight path (MXU-native); looser tolerance = bf16 matmul precision.
    out_bf, hid_bf = encoder_rnn_forward(params, input_seq, input_lengths, t_chunk=4)
    jax.block_until_ready((out_bf, hid_bf))
    assert bool(jnp.all(jnp.isfinite(out_bf))) and bool(jnp.all(jnp.isfinite(hid_bf)))
    assert bool(jnp.allclose(out_bf, ref_out, atol=1e-1, rtol=1e-1)), \
        float(jnp.max(jnp.abs(out_bf - ref_out)))
    assert bool(jnp.allclose(hid_bf, ref_hid, atol=1e-1, rtol=1e-1)), \
        float(jnp.max(jnp.abs(hid_bf - ref_hid)))
    assert bool(jnp.allclose(out_bf[6:, 1], 0.0, atol=1e-6))

    print("KERNEL_OK")
</pallas_src>

<mosaic_0001>
module attributes {stable_mosaic.version = 11 : i64} {
  func.func @_bigru_chunk_kernel(%arg0: i32, %arg1: i32, %arg2: memref<2x1xi32, #tpu.memory_space<vmem>>, %arg3: memref<1x2x128xf32, #tpu.memory_space<vmem>>, %arg4: memref<1x4x2x384xf32, #tpu.memory_space<vmem>>, %arg5: memref<1x128x384xf32, #tpu.memory_space<vmem>>, %arg6: memref<1x1x384xf32, #tpu.memory_space<vmem>>, %arg7: memref<1x4x2x128xf32, #tpu.memory_space<vmem>>, %arg8: memref<1x2x128xf32, #tpu.memory_space<vmem>>, %arg9: memref<2x128xf32, #tpu.memory_space<vmem>>) attributes {dimension_semantics = [#tpu.dimension_semantics<parallel>, #tpu.dimension_semantics<arbitrary>], iteration_bounds = array<i64: 2, 3>, scalar_prefetch = 0 : i64, scratch_operands = 1 : i64, tpu.core_type = #tpu.core_type<tc>, window_params = [{pipeline_mode = #tpu.pipeline_mode<synchronous>, transform_indices = @transform_0, window_bounds = array<i64: 2, 1>}, {transform_indices = @transform_1, window_bounds = array<i64: 1, 2, 128>}, {transform_indices = @transform_2, window_bounds = array<i64: 1, 4, 2, 384>}, {transform_indices = @transform_3, window_bounds = array<i64: 1, 128, 384>}, {transform_indices = @transform_4, window_bounds = array<i64: 1, 1, 384>}, {transform_indices = @transform_5, window_bounds = array<i64: 1, 4, 2, 128>}, {transform_indices = @transform_6, window_bounds = array<i64: 1, 2, 128>}]} {
    %c0_i32 = arith.constant 0 : i32
    %0 = arith.cmpi eq, %arg1, %c0_i32 : i32
    %1 = arith.extui %0 : i1 to i32
    %c0_i32_0 = arith.constant 0 : i32
    %2 = arith.cmpi ne, %1, %c0_i32_0 : i32
    scf.if %2 {
      %c0_72 = arith.constant 0 : index
      %c0_73 = arith.constant 0 : index
      %c0_74 = arith.constant 0 : index
      %237 = vector.load %arg3[%c0_72, %c0_73, %c0_74] : memref<1x2x128xf32, #tpu.memory_space<vmem>>, vector<1x2x128xf32>
      %238 = vector.shape_cast %237 : vector<1x2x128xf32> to vector<2x128xf32>
      %c0_75 = arith.constant 0 : index
      %c0_76 = arith.constant 0 : index
      %239 = vector.load %arg9[%c0_75, %c0_76] : memref<2x128xf32, #tpu.memory_space<vmem>>, vector<2x128xf32>
      tpu.vector_store %arg9[%c0_75, %c0_76], %238 {strides = array<i32>} : memref<2x128xf32, #tpu.memory_space<vmem>>, vector<2x128xf32>,
    } else {
    }
    %c0 = arith.constant 0 : index
    %c0_1 = arith.constant 0 : index
    %3 = vector.load %arg2[%c0, %c0_1] : memref<2x1xi32, #tpu.memory_space<vmem>>, vector<2x1xi32>
    %c0_2 = arith.constant 0 : index
    %c0_3 = arith.constant 0 : index
    %c0_4 = arith.constant 0 : index
    %4 = vector.load %arg5[%c0_2, %c0_3, %c0_4] : memref<1x128x384xf32, #tpu.memory_space<vmem>>, vector<1x128x384xf32>
    %5 = vector.shape_cast %4 : vector<1x128x384xf32> to vector<128x384xf32>
    %c0_5 = arith.constant 0 : index
    %c0_6 = arith.constant 0 : index
    %c0_7 = arith.constant 0 : index
    %6 = vector.load %arg6[%c0_5, %c0_6, %c0_7] : memref<1x1x384xf32, #tpu.memory_space<vmem>>, vector<1x1x384xf32>
    %7 = vector.shape_cast %6 : vector<1x1x384xf32> to vector<1x384xf32>
    %c2_i32 = arith.constant 2 : i32
    %8 = arith.muli %c2_i32, %arg1 : i32
    %c2_i32_8 = arith.constant 2 : i32
    %9 = arith.subi %c2_i32_8, %8 : i32
    %10 = arith.muli %arg0, %9 : i32
    %11 = arith.addi %arg1, %10 : i32
    %c0_9 = arith.constant 0 : index
    %c0_10 = arith.constant 0 : index
    %12 = vector.load %arg9[%c0_9, %c0_10] : memref<2x128xf32, #tpu.memory_space<vmem>>, vector<2x128xf32>
    %c0_i32_11 = arith.constant 0 : i32
    %c2_i32_12 = arith.constant 2 : i32
    %13 = arith.muli %c2_i32_12, %c0_i32_11 : i32
    %c3_i32 = arith.constant 3 : i32
    %14 = arith.subi %c3_i32, %13 : i32
    %15 = arith.muli %arg0, %14 : i32
    %16 = arith.addi %c0_i32_11, %15 : i32
    %c4_i32 = arith.constant 4 : i32
    %17 = arith.muli %11, %c4_i32 : i32
    %18 = arith.addi %17, %16 : i32
    %c0_13 = arith.constant 0 : index
    %19 = arith.index_cast %16 : i32 to index
    %c0_14 = arith.constant 0 : index
    %c0_15 = arith.constant 0 : index
    %20 = vector.load %arg4[%c0_13, %19, %c0_14, %c0_15] : memref<1x4x2x384xf32, #tpu.memory_space<vmem>>, vector<1x1x2x384xf32>
    %21 = vector.shape_cast %20 : vector<1x1x2x384xf32> to vector<2x384xf32>
    %cst = arith.constant dense<0.000000e+00> : vector<2x384xf32>
    %22 = tpu.matmul %12, %5, %cst {dimension_numbers = #tpu.dot_dimension_numbers<[1], [0], [0], [1], [0, 0, 1, 1], [], []>} : vector<2x128xf32>, vector<128x384xf32>, vector<2x384xf32> -> vector<2x384xf32>
    %23 = vector.broadcast %7 : vector<1x384xf32> to vector<2x384xf32>
    %24 = arith.addf %22, %23 : vector<2x384xf32>
    %25 = vector.extract_strided_slice %21 {offsets = [0, 0], sizes = [2, 128], strides = [1, 1]} : vector<2x384xf32> to vector<2x128xf32>
    %26 = vector.extract_strided_slice %24 {offsets = [0, 0], sizes = [2, 128], strides = [1, 1]} : vector<2x384xf32> to vector<2x128xf32>
    %27 = arith.addf %25, %26 : vector<2x128xf32>
    %28 = arith.negf %27 : vector<2x128xf32>
    %29 = math.exp %28 : vector<2x128xf32>
    %cst_16 = arith.constant 1.000000e+00 : f32
    %30 = vector.broadcast %cst_16 : f32 to vector<2x128xf32>
    %31 = arith.addf %30, %29 : vector<2x128xf32>
    %32 = arith.divf %30, %31 : vector<2x128xf32>
    %33 = vector.extract_strided_slice %21 {offsets = [0, 128], sizes = [2, 128], strides = [1, 1]} : vector<2x384xf32> to vector<2x128xf32>
    %34 = vector.extract_strided_slice %24 {offsets = [0, 128], sizes = [2, 128], strides = [1, 1]} : vector<2x384xf32> to vector<2x128xf32>
    %35 = arith.addf %33, %34 : vector<2x128xf32>
    %36 = arith.negf %35 : vector<2x128xf32>
    %37 = math.exp %36 : vector<2x128xf32>
    %cst_17 = arith.constant 1.000000e+00 : f32
    %38 = vector.broadcast %cst_17 : f32 to vector<2x128xf32>
    %39 = arith.addf %38, %37 : vector<2x128xf32>
    %40 = arith.divf %38, %39 : vector<2x128xf32>
    %41 = vector.extract_strided_slice %21 {offsets = [0, 256], sizes = [2, 128], strides = [1, 1]} : vector<2x384xf32> to vector<2x128xf32>
    %42 = vector.extract_strided_slice %24 {offsets = [0, 256], sizes = [2, 128], strides = [1, 1]} : vector<2x384xf32> to vector<2x128xf32>
    %43 = arith.mulf %32, %42 : vector<2x128xf32>
    %44 = arith.addf %41, %43 : vector<2x128xf32>
    %45 = math.tanh %44 : vector<2x128xf32>
    %cst_18 = arith.constant 1.000000e+00 : f32
    %46 = vector.broadcast %cst_18 : f32 to vector<2x128xf32>
    %47 = arith.subf %46, %40 : vector<2x128xf32>
    %48 = arith.mulf %47, %45 : vector<2x128xf32>
    %49 = arith.mulf %40, %12 : vector<2x128xf32>
    %50 = arith.addf %48, %49 : vector<2x128xf32>
    %51 = vector.broadcast %18 : i32 to vector<2x1xi32>
    %52 = arith.cmpi sgt, %3, %51 : vector<2x1xi32>
    %53 = arith.extui %52 : vector<2x1xi1> to vector<2x1xi32>
    %54 = arith.sitofp %53 : vector<2x1xi32> to vector<2x1xf32>
    %55 = vector.broadcast %54 : vector<2x1xf32> to vector<2x128xf32>
    %56 = arith.mulf %55, %50 : vector<2x128xf32>
    %cst_19 = arith.constant 1.000000e+00 : f32
    %57 = vector.broadcast %cst_19 : f32 to vector<2x1xf32>
    %58 = arith.subf %57, %54 : vector<2x1xf32>
    %59 = vector.broadcast %58 : vector<2x1xf32> to vector<2x128xf32>
    %60 = arith.mulf %59, %12 : vector<2x128xf32>
    %61 = arith.addf %56, %60 : vector<2x128xf32>
    %62 = vector.broadcast %54 : vector<2x1xf32> to vector<2x128xf32>
    %63 = arith.mulf %62, %61 : vector<2x128xf32>
    %c0_20 = arith.constant 0 : index
    %64 = arith.index_cast %16 : i32 to index
    %c0_21 = arith.constant 0 : index
    %c0_22 = arith.constant 0 : index
    %65 = vector.load %arg7[%c0_20, %64, %c0_21, %c0_22] : memref<1x4x2x128xf32, #tpu.memory_space<vmem>>, vector<1x1x2x128xf32>
    %66 = vector.shape_cast %65 : vector<1x1x2x128xf32> to vector<2x128xf32>
    %67 = vector.shape_cast %63 : vector<2x128xf32> to vector<1x1x2x128xf32>
    tpu.vector_store %arg7[%c0_20, %64, %c0_21, %c0_22], %67 {strides = array<i32>} : memref<1x4x2x128xf32, #tpu.memory_space<vmem>>, vector<1x1x2x128xf32>,
    %c1_i32 = arith.constant 1 : i32
    %c2_i32_23 = arith.constant 2 : i32
    %68 = arith.muli %c2_i32_23, %c1_i32 : i32
    %c3_i32_24 = arith.constant 3 : i32
    %69 = arith.subi %c3_i32_24, %68 : i32
    %70 = arith.muli %arg0, %69 : i32
    %71 = arith.addi %c1_i32, %70 : i32
    %c4_i32_25 = arith.constant 4 : i32
    %72 = arith.muli %11, %c4_i32_25 : i32
    %73 = arith.addi %72, %71 : i32
    %c0_26 = arith.constant 0 : index
    %74 = arith.index_cast %71 : i32 to index
    %c0_27 = arith.constant 0 : index
    %c0_28 = arith.constant 0 : index
    %75 = vector.load %arg4[%c0_26, %74, %c0_27, %c0_28] : memref<1x4x2x384xf32, #tpu.memory_space<vmem>>, vector<1x1x2x384xf32>
    %76 = vector.shape_cast %75 : vector<1x1x2x384xf32> to vector<2x384xf32>
    %cst_29 = arith.constant dense<0.000000e+00> : vector<2x384xf32>
    %77 = tpu.matmul %61, %5, %cst_29 {dimension_numbers = #tpu.dot_dimension_numbers<[1], [0], [0], [1], [0, 0, 1, 1], [], []>} : vector<2x128xf32>, vector<128x384xf32>, vector<2x384xf32> -> vector<2x384xf32>
    %78 = vector.broadcast %7 : vector<1x384xf32> to vector<2x384xf32>
    %79 = arith.addf %77, %78 : vector<2x384xf32>
    %80 = vector.extract_strided_slice %76 {offsets = [0, 0], sizes = [2, 128], strides = [1, 1]} : vector<2x384xf32> to vector<2x128xf32>
    %81 = vector.extract_strided_slice %79 {offsets = [0, 0], sizes = [2, 128], strides = [1, 1]} : vector<2x384xf32> to vector<2x128xf32>
    %82 = arith.addf %80, %81 : vector<2x128xf32>
    %83 = arith.negf %82 : vector<2x128xf32>
    %84 = math.exp %83 : vector<2x128xf32>
    %cst_30 = arith.constant 1.000000e+00 : f32
    %85 = vector.broadcast %cst_30 : f32 to vector<2x128xf32>
    %86 = arith.addf %85, %84 : vector<2x128xf32>
    %87 = arith.divf %85, %86 : vector<2x128xf32>
    %88 = vector.extract_strided_slice %76 {offsets = [0, 128], sizes = [2, 128], strides = [1, 1]} : vector<2x384xf32> to vector<2x128xf32>
    %89 = vector.extract_strided_slice %79 {offsets = [0, 128], sizes = [2, 128], strides = [1, 1]} : vector<2x384xf32> to vector<2x128xf32>
    %90 = arith.addf %88, %89 : vector<2x128xf32>
    %91 = arith.negf %90 : vector<2x128xf32>
    %92 = math.exp %91 : vector<2x128xf32>
    %cst_31 = arith.constant 1.000000e+00 : f32
    %93 = vector.broadcast %cst_31 : f32 to vector<2x128xf32>
    %94 = arith.addf %93, %92 : vector<2x128xf32>
    %95 = arith.divf %93, %94 : vector<2x128xf32>
    %96 = vector.extract_strided_slice %76 {offsets = [0, 256], sizes = [2, 128], strides = [1, 1]} : vector<2x384xf32> to vector<2x128xf32>
    %97 = vector.extract_strided_slice %79 {offsets = [0, 256], sizes = [2, 128], strides = [1, 1]} : vector<2x384xf32> to vector<2x128xf32>
    %98 = arith.mulf %87, %97 : vector<2x128xf32>
    %99 = arith.addf %96, %98 : vector<2x128xf32>
    %100 = math.tanh %99 : vector<2x128xf32>
    %cst_32 = arith.constant 1.000000e+00 : f32
    %101 = vector.broadcast %cst_32 : f32 to vector<2x128xf32>
    %102 = arith.subf %101, %95 : vector<2x128xf32>
    %103 = arith.mulf %102, %100 : vector<2x128xf32>
    %104 = arith.mulf %95, %61 : vector<2x128xf32>
    %105 = arith.addf %103, %104 : vector<2x128xf32>
    %106 = vector.broadcast %73 : i32 to vector<2x1xi32>
    %107 = arith.cmpi sgt, %3, %106 : vector<2x1xi32>
    %108 = arith.extui %107 : vector<2x1xi1> to vector<2x1xi32>
    %109 = arith.sitofp %108 : vector<2x1xi32> to vector<2x1xf32>
    %110 = vector.broadcast %109 : vector<2x1xf32> to vector<2x128xf32>
    %111 = arith.mulf %110, %105 : vector<2x128xf32>
    %cst_33 = arith.constant 1.000000e+00 : f32
    %112 = vector.broadcast %cst_33 : f32 to vector<2x1xf32>
    %113 = arith.subf %112, %109 : vector<2x1xf32>
    %114 = vector.broadcast %113 : vector<2x1xf32> to vector<2x128xf32>
    %115 = arith.mulf %114, %61 : vector<2x128xf32>
    %116 = arith.addf %111, %115 : vector<2x128xf32>
    %117 = vector.broadcast %109 : vector<2x1xf32> to vector<2x128xf32>
    %118 = arith.mulf %117, %116 : vector<2x128xf32>
    %c0_34 = arith.constant 0 : index
    %119 = arith.index_cast %71 : i32 to index
    %c0_35 = arith.constant 0 : index
    %c0_36 = arith.constant 0 : index
    %120 = vector.load %arg7[%c0_34, %119, %c0_35, %c0_36] : memref<1x4x2x128xf32, #tpu.memory_space<vmem>>, vector<1x1x2x128xf32>
    %121 = vector.shape_cast %120 : vector<1x1x2x128xf32> to vector<2x128xf32>
    %122 = vector.shape_cast %118 : vector<2x128xf32> to vector<1x1x2x128xf32>
    tpu.vector_store %arg7[%c0_34, %119, %c0_35, %c0_36], %122 {strides = array<i32>} : memref<1x4x2x128xf32, #tpu.memory_space<vmem>>, vector<1x1x2x128xf32>,
    %c2_i32_37 = arith.constant 2 : i32
    %c2_i32_38 = arith.constant 2 : i32
    %123 = arith.muli %c2_i32_38, %c2_i32_37 : i32
    %c3_i32_39 = arith.constant 3 : i32
    %124 = arith.subi %c3_i32_39, %123 : i32
    %125 = arith.muli %arg0, %124 : i32
    %126 = arith.addi %c2_i32_37, %125 : i32
    %c4_i32_40 = arith.constant 4 : i32
    %127 = arith.muli %11, %c4_i32_40 : i32
    %128 = arith.addi %127, %126 : i32
    %c0_41 = arith.constant 0 : index
    %129 = arith.index_cast %126 : i32 to index
    %c0_42 = arith.constant 0 : index
    %c0_43 = arith.constant 0 : index
    %130 = vector.load %arg4[%c0_41, %129, %c0_42, %c0_43] : memref<1x4x2x384xf32, #tpu.memory_space<vmem>>, vector<1x1x2x384xf32>
    %131 = vector.shape_cast %130 : vector<1x1x2x384xf32> to vector<2x384xf32>
    %cst_44 = arith.constant dense<0.000000e+00> : vector<2x384xf32>
    %132 = tpu.matmul %116, %5, %cst_44 {dimension_numbers = #tpu.dot_dimension_numbers<[1], [0], [0], [1], [0, 0, 1, 1], [], []>} : vector<2x128xf32>, vector<128x384xf32>, vector<2x384xf32> -> vector<2x384xf32>
    %133 = vector.broadcast %7 : vector<1x384xf32> to vector<2x384xf32>
    %134 = arith.addf %132, %133 : vector<2x384xf32>
    %135 = vector.extract_strided_slice %131 {offsets = [0, 0], sizes = [2, 128], strides = [1, 1]} : vector<2x384xf32> to vector<2x128xf32>
    %136 = vector.extract_strided_slice %134 {offsets = [0, 0], sizes = [2, 128], strides = [1, 1]} : vector<2x384xf32> to vector<2x128xf32>
    %137 = arith.addf %135, %136 : vector<2x128xf32>
    %138 = arith.negf %137 : vector<2x128xf32>
    %139 = math.exp %138 : vector<2x128xf32>
    %cst_45 = arith.constant 1.000000e+00 : f32
    %140 = vector.broadcast %cst_45 : f32 to vector<2x128xf32>
    %141 = arith.addf %140, %139 : vector<2x128xf32>
    %142 = arith.divf %140, %141 : vector<2x128xf32>
    %143 = vector.extract_strided_slice %131 {offsets = [0, 128], sizes = [2, 128], strides = [1, 1]} : vector<2x384xf32> to vector<2x128xf32>
    %144 = vector.extract_strided_slice %134 {offsets = [0, 128], sizes = [2, 128], strides = [1, 1]} : vector<2x384xf32> to vector<2x128xf32>
    %145 = arith.addf %143, %144 : vector<2x128xf32>
    %146 = arith.negf %145 : vector<2x128xf32>
    %147 = math.exp %146 : vector<2x128xf32>
    %cst_46 = arith.constant 1.000000e+00 : f32
    %148 = vector.broadcast %cst_46 : f32 to vector<2x128xf32>
    %149 = arith.addf %148, %147 : vector<2x128xf32>
    %150 = arith.divf %148, %149 : vector<2x128xf32>
    %151 = vector.extract_strided_slice %131 {offsets = [0, 256], sizes = [2, 128], strides = [1, 1]} : vector<2x384xf32> to vector<2x128xf32>
    %152 = vector.extract_strided_slice %134 {offsets = [0, 256], sizes = [2, 128], strides = [1, 1]} : vector<2x384xf32> to vector<2x128xf32>
    %153 = arith.mulf %142, %152 : vector<2x128xf32>
    %154 = arith.addf %151, %153 : vector<2x128xf32>
    %155 = math.tanh %154 : vector<2x128xf32>
    %cst_47 = arith.constant 1.000000e+00 : f32
    %156 = vector.broadcast %cst_47 : f32 to vector<2x128xf32>
    %157 = arith.subf %156, %150 : vector<2x128xf32>
    %158 = arith.mulf %157, %155 : vector<2x128xf32>
    %159 = arith.mulf %150, %116 : vector<2x128xf32>
    %160 = arith.addf %158, %159 : vector<2x128xf32>
    %161 = vector.broadcast %128 : i32 to vector<2x1xi32>
    %162 = arith.cmpi sgt, %3, %161 : vector<2x1xi32>
    %163 = arith.extui %162 : vector<2x1xi1> to vector<2x1xi32>
    %164 = arith.sitofp %163 : vector<2x1xi32> to vector<2x1xf32>
    %165 = vector.broadcast %164 : vector<2x1xf32> to vector<2x128xf32>
    %166 = arith.mulf %165, %160 : vector<2x128xf32>
    %cst_48 = arith.constant 1.000000e+00 : f32
    %167 = vector.broadcast %cst_48 : f32 to vector<2x1xf32>
    %168 = arith.subf %167, %164 : vector<2x1xf32>
    %169 = vector.broadcast %168 : vector<2x1xf32> to vector<2x128xf32>
    %170 = arith.mulf %169, %116 : vector<2x128xf32>
    %171 = arith.addf %166, %170 : vector<2x128xf32>
    %172 = vector.broadcast %164 : vector<2x1xf32> to vector<2x128xf32>
    %173 = arith.mulf %172, %171 : vector<2x128xf32>
    %c0_49 = arith.constant 0 : index
    %174 = arith.index_cast %126 : i32 to index
    %c0_50 = arith.constant 0 : index
    %c0_51 = arith.constant 0 : index
    %175 = vector.load %arg7[%c0_49, %174, %c0_50, %c0_51] : memref<1x4x2x128xf32, #tpu.memory_space<vmem>>, vector<1x1x2x128xf32>
    %176 = vector.shape_cast %175 : vector<1x1x2x128xf32> to vector<2x128xf32>
    %177 = vector.shape_cast %173 : vector<2x128xf32> to vector<1x1x2x128xf32>
    tpu.vector_store %arg7[%c0_49, %174, %c0_50, %c0_51], %177 {strides = array<i32>} : memref<1x4x2x128xf32, #tpu.memory_space<vmem>>, vector<1x1x2x128xf32>,
    %c3_i32_52 = arith.constant 3 : i32
    %c2_i32_53 = arith.constant 2 : i32
    %178 = arith.muli %c2_i32_53, %c3_i32_52 : i32
    %c3_i32_54 = arith.constant 3 : i32
    %179 = arith.subi %c3_i32_54, %178 : i32
    %180 = arith.muli %arg0, %179 : i32
    %181 = arith.addi %c3_i32_52, %180 : i32
    %c4_i32_55 = arith.constant 4 : i32
    %182 = arith.muli %11, %c4_i32_55 : i32
    %183 = arith.addi %182, %181 : i32
    %c0_56 = arith.constant 0 : index
    %184 = arith.index_cast %181 : i32 to index
    %c0_57 = arith.constant 0 : index
    %c0_58 = arith.constant 0 : index
    %185 = vector.load %arg4[%c0_56, %184, %c0_57, %c0_58] : memref<1x4x2x384xf32, #tpu.memory_space<vmem>>, vector<1x1x2x384xf32>
    %186 = vector.shape_cast %185 : vector<1x1x2x384xf32> to vector<2x384xf32>
    %cst_59 = arith.constant dense<0.000000e+00> : vector<2x384xf32>
    %187 = tpu.matmul %171, %5, %cst_59 {dimension_numbers = #tpu.dot_dimension_numbers<[1], [0], [0], [1], [0, 0, 1, 1], [], []>} : vector<2x128xf32>, vector<128x384xf32>, vector<2x384xf32> -> vector<2x384xf32>
    %188 = vector.broadcast %7 : vector<1x384xf32> to vector<2x384xf32>
    %189 = arith.addf %187, %188 : vector<2x384xf32>
    %190 = vector.extract_strided_slice %186 {offsets = [0, 0], sizes = [2, 128], strides = [1, 1]} : vector<2x384xf32> to vector<2x128xf32>
    %191 = vector.extract_strided_slice %189 {offsets = [0, 0], sizes = [2, 128], strides = [1, 1]} : vector<2x384xf32> to vector<2x128xf32>
    %192 = arith.addf %190, %191 : vector<2x128xf32>
    %193 = arith.negf %192 : vector<2x128xf32>
    %194 = math.exp %193 : vector<2x128xf32>
    %cst_60 = arith.constant 1.000000e+00 : f32
    %195 = vector.broadcast %cst_60 : f32 to vector<2x128xf32>
    %196 = arith.addf %195, %194 : vector<2x128xf32>
    %197 = arith.divf %195, %196 : vector<2x128xf32>
    %198 = vector.extract_strided_slice %186 {offsets = [0, 128], sizes = [2, 128], strides = [1, 1]} : vector<2x384xf32> to vector<2x128xf32>
    %199 = vector.extract_strided_slice %189 {offsets = [0, 128], sizes = [2, 128], strides = [1, 1]} : vector<2x384xf32> to vector<2x128xf32>
    %200 = arith.addf %198, %199 : vector<2x128xf32>
    %201 = arith.negf %200 : vector<2x128xf32>
    %202 = math.exp %201 : vector<2x128xf32>
    %cst_61 = arith.constant 1.000000e+00 : f32
    %203 = vector.broadcast %cst_61 : f32 to vector<2x128xf32>
    %204 = arith.addf %203, %202 : vector<2x128xf32>
    %205 = arith.divf %203, %204 : vector<2x128xf32>
    %206 = vector.extract_strided_slice %186 {offsets = [0, 256], sizes = [2, 128], strides = [1, 1]} : vector<2x384xf32> to vector<2x128xf32>
    %207 = vector.extract_strided_slice %189 {offsets = [0, 256], sizes = [2, 128], strides = [1, 1]} : vector<2x384xf32> to vector<2x128xf32>
    %208 = arith.mulf %197, %207 : vector<2x128xf32>
    %209 = arith.addf %206, %208 : vector<2x128xf32>
    %210 = math.tanh %209 : vector<2x128xf32>
    %cst_62 = arith.constant 1.000000e+00 : f32
    %211 = vector.broadcast %cst_62 : f32 to vector<2x128xf32>
    %212 = arith.subf %211, %205 : vector<2x128xf32>
    %213 = arith.mulf %212, %210 : vector<2x128xf32>
    %214 = arith.mulf %205, %171 : vector<2x128xf32>
    %215 = arith.addf %213, %214 : vector<2x128xf32>
    %216 = vector.broadcast %183 : i32 to vector<2x1xi32>
    %217 = arith.cmpi sgt, %3, %216 : vector<2x1xi32>
    %218 = arith.extui %217 : vector<2x1xi1> to vector<2x1xi32>
    %219 = arith.sitofp %218 : vector<2x1xi32> to vector<2x1xf32>
    %220 = vector.broadcast %219 : vector<2x1xf32> to vector<2x128xf32>
    %221 = arith.mulf %220, %215 : vector<2x128xf32>
    %cst_63 = arith.constant 1.000000e+00 : f32
    %222 = vector.broadcast %cst_63 : f32 to vector<2x1xf32>
    %223 = arith.subf %222, %219 : vector<2x1xf32>
    %224 = vector.broadcast %223 : vector<2x1xf32> to vector<2x128xf32>
    %225 = arith.mulf %224, %171 : vector<2x128xf32>
    %226 = arith.addf %221, %225 : vector<2x128xf32>
    %227 = vector.broadcast %219 : vector<2x1xf32> to vector<2x128xf32>
    %228 = arith.mulf %227, %226 : vector<2x128xf32>
    %c0_64 = arith.constant 0 : index
    %229 = arith.index_cast %181 : i32 to index
    %c0_65 = arith.constant 0 : index
    %c0_66 = arith.constant 0 : index
    %230 = vector.load %arg7[%c0_64, %229, %c0_65, %c0_66] : memref<1x4x2x128xf32, #tpu.memory_space<vmem>>, vector<1x1x2x128xf32>
    %231 = vector.shape_cast %230 : vector<1x1x2x128xf32> to vector<2x128xf32>
    %232 = vector.shape_cast %228 : vector<2x128xf32> to vector<1x1x2x128xf32>
    tpu.vector_store %arg7[%c0_64, %229, %c0_65, %c0_66], %232 {strides = array<i32>} : memref<1x4x2x128xf32, #tpu.memory_space<vmem>>, vector<1x1x2x128xf32>,
    %c4_i32_67 = arith.constant 4 : i32
    %c0_68 = arith.constant 0 : index
    %c0_69 = arith.constant 0 : index
    %233 = vector.load %arg9[%c0_68, %c0_69] : memref<2x128xf32, #tpu.memory_space<vmem>>, vector<2x128xf32>
    tpu.vector_store %arg9[%c0_68, %c0_69], %226 {strides = array<i32>} : memref<2x128xf32, #tpu.memory_space<vmem>>, vector<2x128xf32>,
    %c2_i32_70 = arith.constant 2 : i32
    %234 = arith.cmpi eq, %arg1, %c2_i32_70 : i32
    %235 = arith.extui %234 : i1 to i32
    %c0_i32_71 = arith.constant 0 : i32
    %236 = arith.cmpi ne, %235, %c0_i32_71 : i32
    scf.if %236 {
      %c0_72 = arith.constant 0 : index
      %c0_73 = arith.constant 0 : index
      %c0_74 = arith.constant 0 : index
      %237 = vector.load %arg8[%c0_72, %c0_73, %c0_74] : memref<1x2x128xf32, #tpu.memory_space<vmem>>, vector<1x2x128xf32>
      %238 = vector.shape_cast %237 : vector<1x2x128xf32> to vector<2x128xf32>
      %239 = vector.shape_cast %226 : vector<2x128xf32> to vector<1x2x128xf32>
      tpu.vector_store %arg8[%c0_72, %c0_73, %c0_74], %239 {strides = array<i32>} : memref<1x2x128xf32, #tpu.memory_space<vmem>>, vector<1x2x128xf32>,
    } else {
    }
    return
  }
  func.func @transform_0(%arg0: i32, %arg1: i32) -> (i32, i32) {
    %c0_i32 = arith.constant 0 : i32
    %c0_i32_0 = arith.constant 0 : i32
    %c0_i32_1 = arith.constant 0 : i32
    return %c0_i32, %c0_i32_0 : i32, i32
  }
  func.func @transform_1(%arg0: i32, %arg1: i32) -> (i32, i32, i32) {
    %c0_i32 = arith.constant 0 : i32
    %c0_i32_0 = arith.constant 0 : i32
    %c0_i32_1 = arith.constant 0 : i32
    return %arg0, %c0_i32, %c0_i32_0 : i32, i32, i32
  }
  func.func @transform_2(%arg0: i32, %arg1: i32) -> (i32, i32, i32, i32) {
    %c2_i32 = arith.constant 2 : i32
    %0 = arith.muli %c2_i32, %arg1 : i32
    %c2_i32_0 = arith.constant 2 : i32
    %1 = arith.subi %c2_i32_0, %0 : i32
    %2 = arith.muli %arg0, %1 : i32
    %3 = arith.addi %arg1, %2 : i32
    %c0_i32 = arith.constant 0 : i32
    %c0_i32_1 = arith.constant 0 : i32
    %c0_i32_2 = arith.constant 0 : i32
    return %arg0, %3, %c0_i32, %c0_i32_1 : i32, i32, i32, i32
  }
  func.func @transform_3(%arg0: i32, %arg1: i32) -> (i32, i32, i32) {
    %c0_i32 = arith.constant 0 : i32
    %c0_i32_0 = arith.constant 0 : i32
    %c0_i32_1 = arith.constant 0 : i32
    return %arg0, %c0_i32, %c0_i32_0 : i32, i32, i32
  }
  func.func @transform_4(%arg0: i32, %arg1: i32) -> (i32, i32, i32) {
    %c0_i32 = arith.constant 0 : i32
    %c0_i32_0 = arith.constant 0 : i32
    %c0_i32_1 = arith.constant 0 : i32
    return %arg0, %c0_i32, %c0_i32_0 : i32, i32, i32
  }
  func.func @transform_5(%arg0: i32, %arg1: i32) -> (i32, i32, i32, i32) {
    %c2_i32 = arith.constant 2 : i32
    %0 = arith.muli %c2_i32, %arg1 : i32
    %c2_i32_0 = arith.constant 2 : i32
    %1 = arith.subi %c2_i32_0, %0 : i32
    %2 = arith.muli %arg0, %1 : i32
    %3 = arith.addi %arg1, %2 : i32
    %c0_i32 = arith.constant 0 : i32
    %c0_i32_1 = arith.constant 0 : i32
    %c0_i32_2 = arith.constant 0 : i32
    return %arg0, %3, %c0_i32, %c0_i32_1 : i32, i32, i32, i32
  }
  func.func @transform_6(%arg0: i32, %arg1: i32) -> (i32, i32, i32) {
    %c0_i32 = arith.constant 0 : i32
    %c0_i32_0 = arith.constant 0 : i32
    %c0_i32_1 = arith.constant 0 : i32
    return %arg0, %c0_i32, %c0_i32_0 : i32, i32, i32
  }
}

</mosaic_0001>

<llo_original>
// kernel: tpu_custom_call.1
$region0: #{tpu_custom_call.1}
  #allocation0 [shape = 'u32[]', space=smem, size = 0x4, offset = 0x4, fixed_abs, tag = 'smem constant byte address 0x4 - core index']
  #allocation1 [shape = 'u32[144,128]{1,0:T(1,128)}', space=vmem, size = 0x12000, scoped, tag = 'internal scratch']
  #allocation2 [shape = 'f32[2,128]{1,0:T(2,128)}', space=vmem, size = 0x400, scoped, tag = 'scratch operand']
  %s0 = inlined_call_operand.vmem [shape: s32[2,1], index: 0, kind: input, shape index: {}]
  %s1 = inlined_call_operand.vmem [shape: f32[2,2,128], index: 1, kind: input, shape index: {}]
  %s2 = inlined_call_operand.hbm [shape: f32[2,12,2,384], index: 2, kind: input, shape index: {}]
  %s3 = inlined_call_operand.hbm [shape: f32[2,128,384], index: 3, kind: input, shape index: {}]
  %s4 = inlined_call_operand.vmem [shape: f32[2,1,384], index: 4, kind: input, shape index: {}]
  %s5 = inlined_call_operand.hbm [shape: f32[2,12,2,128], index: 5, kind: output, shape index: {0}]
  %s6 = inlined_call_operand.hbm [shape: f32[2,2,128], index: 6, kind: output, shape index: {1}]
  %7 = xla_tuple %s5, %s6
  %s8 = sld [smem:[#allocation0]]
  $region77: #{tpu_custom_call.1} parent=0
    _
  %s10 = ssub.s32 1, %s8
  %s11 = scalar_select 0, %s10, %s8
  $region1: #{tpu_custom_call.1} parent=0
    #allocation3 [shape = 'u8[24576]{0}', space=vmem, size = 0x6000, scoped, tag = 'input window, operand 2']
    #allocation4 [shape = 's32[2]{0}', space=sflag, size = 0x8, scoped, tag = 'scoped memory for tpu_custom_call.1']
    #allocation5 [shape = 's32[2]{0}', space=sflag, size = 0x8, scoped, tag = 'scoped memory for tpu_custom_call.1']
    #allocation6 [shape = 'u8[393216]{0}', space=vmem, size = 0x60000, scoped, tag = 'input window, operand 3']
    #allocation7 [shape = 's32[2]{0}', space=sflag, size = 0x8, scoped, tag = 'scoped memory for tpu_custom_call.1']
    #allocation8 [shape = 'u8[8192]{0}', space=vmem, size = 0x2000, scoped, tag = 'output window, operand 0']
    #allocation9 [shape = 'u8[2048]{0}', space=vmem, size = 0x800, scoped, tag = 'output window, operand 1']
    #allocation10 [shape = 's32[2]{0}', space=sflag, size = 0x8, scoped, tag = 'scoped memory for tpu_custom_call.1']
    %12 = vsyncpa [#allocation4], 0
    %s13 = scalar_lea.sflag [#allocation4], 1
    %14 = vsyncpa %s13, 0
    %15 = vsyncpa [#allocation7], 0
    %s16 = scalar_lea.sflag [#allocation7], 1
    %17 = vsyncpa %s16, 0
    %18 = vsyncpa [#allocation5], 0
    %s19 = scalar_lea.sflag [#allocation5], 1
    %20 = vsyncpa %s19, 0
    %21 = vsyncpa [#allocation10], 0
    %s22 = scalar_lea.sflag [#allocation10], 1
    %23 = vsyncpa %s22, 0
    loop: start=0, step=1, limit=8
    $region2: #{tpu_custom_call.1} parent=1 // loop_pre_header
      _
    $region3: #{tpu_custom_call.1} parent=1 // loop_header
      %s25 = sphi 0, %s29
      %p26 = scmp.ge.s32.totalorder %s25, 8
      %s32 = sphi 0, %s44
      %s33 = sphi 0, %s40
      %s34 = sphi 0, %s32
      %s35 = sphi 0, %s33
      %s36 = sphi 0, %s34
      %s37 = sphi 0, %s35
      %s45 = sphi 0, %s45
      %s47 = sphi 0, %s45
      %s48 = sphi 0, %s47
      %s62 = sphi 0, %s48
      %s68 = sphi 0, %s70
      %s71 = sphi 0, %s68
      %s72 = sphi 0, %s71
      %s88 = sphi 0, %s72
      %s104 = sphi 0, %s106
      %s107 = sphi 0, %s104
      %s108 = sphi 0, %s107
      %s124 = sphi 0, %s108
      %s130 = sphi 0, %s132
      %s133 = sphi 0, %s130
      %s134 = sphi 0, %s133
      %s150 = sphi 0, %s134
      %s156 = sphi 0, %s158
      %s159 = sphi 0, %s156
      %s160 = sphi 0, %s159
      %s176 = sphi 0, %s160
      %s192 = sphi 0, %s194
      %s195 = sphi 0, %s192
      %s196 = sphi 0, %s195
      %s212 = sphi 0, %s196
      %s218 = sphi 0, %s220
      %s221 = sphi 0, %s218
      %s222 = sphi 0, %s221
      %s238 = sphi 0, %s222
    $region4: #{tpu_custom_call.1} parent=1 // loop_header_branch
      %28 = sbr.rel (%p26) target = $region8
    $region5: #{tpu_custom_call.1} parent=1 // loop_body
      %s30 = ssub.s32 %s25, 1
      %s31 = ssub.s32 %s25, 2
      %s38 = sadd.s32 1, %s33
      %p39 = scmp.ge.s32.totalorder %s38, 3
      %s40 = scalar_select %p39, 0, %s38
      %s41 = sadd.s32 1, %s32
      %s42 = scalar_select %p39, %s41, %s32
      %p43 = scmp.ge.s32.totalorder %s42, 2
      %s44 = scalar_select %p43, 0, %s42
      %s46 = sadd.s32 %s45, 1
      %p49 = scmp.eq.s32.totalorder %s25, 5
      %p50 = scmp.ne.s32.totalorder %s45, %s47
      %p51 = scmp.eq.s32.totalorder %s25, 0
      %p52 = por %p50, %p51
      %p53 = scmp.ne.s32.totalorder %s45, %s47
      %p54 = scmp.eq.s32.totalorder %s30, 5
      %p55 = por %p53, %p54
      %p56 = scmp.ne.s32.totalorder %s47, %s48
      %p57 = scmp.eq.s32.totalorder %s30, 0
      %p58 = por %p56, %p57
      %p59 = scmp.ne.s32.totalorder %s47, %s48
      %p60 = scmp.eq.s32.totalorder %s31, 5
      %p61 = por %p59, %p60
      %p63 = scmp.ne.s32.totalorder %s48, %s62
      %p64 = scmp.eq.s32.totalorder %s31, 0
      %p65 = por %p63, %p64
      %s66 = ssub.s32 %s32, %s44
      %p67 = scmp.eq.s32.totalorder %s66, 0
      %s69 = sadd.s32 %s68, 1
      %s70 = scalar_select %p67, %s68, %s69
      %p73 = pneg %p67
      %p74 = scmp.eq.s32.totalorder %s25, 5
      %p75 = por %p73, %p74
      %p76 = scmp.ne.s32.totalorder %s68, %s71
      %p77 = scmp.eq.s32.totalorder %s25, 0
      %p78 = por %p76, %p77
      %p79 = scmp.ne.s32.totalorder %s68, %s71
      %p80 = scmp.eq.s32.totalorder %s30, 5
      %p81 = por %p79, %p80
      %p82 = scmp.ne.s32.totalorder %s71, %s72
      %p83 = scmp.eq.s32.totalorder %s30, 0
      %p84 = por %p82, %p83
      %p85 = scmp.ne.s32.totalorder %s71, %s72
      %p86 = scmp.eq.s32.totalorder %s31, 5
      %p87 = por %p85, %p86
      %p89 = scmp.ne.s32.totalorder %s72, %s88
      %p90 = scmp.eq.s32.totalorder %s31, 0
      %p91 = por %p89, %p90
      %s92 = smul.u32 %s33, 2
      %s93 = ssub.s32 2, %s92
      %s94 = smul.u32 %s32, %s93
      %s95 = sadd.s32 %s33, %s94
      %s96 = smul.u32 %s40, 2
      %s97 = ssub.s32 2, %s96
      %s98 = smul.u32 %s44, %s97
      %s99 = sadd.s32 %s40, %s98
      %s100 = ssub.s32 %s32, %s44
      %s101 = ssub.s32 %s95, %s99
      %s102 = sor.u32 %s100, %s101
      %p103 = scmp.eq.s32.totalorder %s102, 0
      %s105 = sadd.s32 %s104, 1
      %s106 = scalar_select %p103, %s104, %s105
      %p109 = pneg %p103
      %p110 = scmp.eq.s32.totalorder %s25, 5
      %p111 = por %p109, %p110
      %p112 = scmp.ne.s32.totalorder %s104, %s107
      %p113 = scmp.eq.s32.totalorder %s25, 0
      %p114 = por %p112, %p113
      %p115 = scmp.ne.s32.totalorder %s104, %s107
      %p116 = scmp.eq.s32.totalorder %s30, 5
      %p117 = por %p115, %p116
      %p118 = scmp.ne.s32.totalorder %s107, %s108
      %p119 = scmp.eq.s32.totalorder %s30, 0
      %p120 = por %p118, %p119
      %p121 = scmp.ne.s32.totalorder %s107, %s108
      %p122 = scmp.eq.s32.totalorder %s31, 5
      %p123 = por %p121, %p122
      %p125 = scmp.ne.s32.totalorder %s108, %s124
      %p126 = scmp.eq.s32.totalorder %s31, 0
      %p127 = por %p125, %p126
      %s128 = ssub.s32 %s32, %s44
      %p129 = scmp.eq.s32.totalorder %s128, 0
      %s131 = sadd.s32 %s130, 1
      %s132 = scalar_select %p129, %s130, %s131
      %p135 = pneg %p129
      %p136 = scmp.eq.s32.totalorder %s25, 5
      %p137 = por %p135, %p136
      %p138 = scmp.ne.s32.totalorder %s130, %s133
      %p139 = scmp.eq.s32.totalorder %s25, 0
      %p140 = por %p138, %p139
      %p141 = scmp.ne.s32.totalorder %s130, %s133
      %p142 = scmp.eq.s32.totalorder %s30, 5
      %p143 = por %p141, %p142
      %p144 = scmp.ne.s32.totalorder %s133, %s134
      %p145 = scmp.eq.s32.totalorder %s30, 0
      %p146 = por %p144, %p145
      %p147 = scmp.ne.s32.totalorder %s133, %s134
      %p148 = scmp.eq.s32.totalorder %s31, 5
      %p149 = por %p147, %p148
      %p151 = scmp.ne.s32.totalorder %s134, %s150
      %p152 = scmp.eq.s32.totalorder %s31, 0
      %p153 = por %p151, %p152
      %s154 = ssub.s32 %s32, %s44
      %p155 = scmp.eq.s32.totalorder %s154, 0
      %s157 = sadd.s32 %s156, 1
      %s158 = scalar_select %p155, %s156, %s157
      %p161 = pneg %p155
      %p162 = scmp.eq.s32.totalorder %s25, 5
      %p163 = por %p161, %p162
      %p164 = scmp.ne.s32.totalorder %s156, %s159
      %p165 = scmp.eq.s32.totalorder %s25, 0
      %p166 = por %p164, %p165
      %p167 = scmp.ne.s32.totalorder %s156, %s159
      %p168 = scmp.eq.s32.totalorder %s30, 5
      %p169 = por %p167, %p168
      %p170 = scmp.ne.s32.totalorder %s159, %s160
      %p171 = scmp.eq.s32.totalorder %s30, 0
      %p172 = por %p170, %p171
      %p173 = scmp.ne.s32.totalorder %s159, %s160
      %p174 = scmp.eq.s32.totalorder %s31, 5
      %p175 = por %p173, %p174
      %p177 = scmp.ne.s32.totalorder %s160, %s176
      %p178 = scmp.eq.s32.totalorder %s31, 0
      %p179 = por %p177, %p178
      %s180 = smul.u32 %s33, 2
      %s181 = ssub.s32 2, %s180
      %s182 = smul.u32 %s32, %s181
      %s183 = sadd.s32 %s33, %s182
      %s184 = smul.u32 %s40, 2
      %s185 = ssub.s32 2, %s184
      %s186 = smul.u32 %s44, %s185
      %s187 = sadd.s32 %s40, %s186
      %s188 = ssub.s32 %s32, %s44
      %s189 = ssub.s32 %s183, %s187
      %s190 = sor.u32 %s188, %s189
      %p191 = scmp.eq.s32.totalorder %s190, 0
      %s193 = sadd.s32 %s192, 1
      %s194 = scalar_select %p191, %s192, %s193
      %p197 = pneg %p191
      %p198 = scmp.eq.s32.totalorder %s25, 5
      %p199 = por %p197, %p198
      %p200 = scmp.ne.s32.totalorder %s192, %s195
      %p201 = scmp.eq.s32.totalorder %s25, 0
      %p202 = por %p200, %p201
      %p203 = scmp.ne.s32.totalorder %s192, %s195
      %p204 = scmp.eq.s32.totalorder %s30, 5
      %p205 = por %p203, %p204
      %p206 = scmp.ne.s32.totalorder %s195, %s196
      %p207 = scmp.eq.s32.totalorder %s30, 0
      %p208 = por %p206, %p207
      %p209 = scmp.ne.s32.totalorder %s195, %s196
      %p210 = scmp.eq.s32.totalorder %s31, 5
      %p211 = por %p209, %p210
      %p213 = scmp.ne.s32.totalorder %s196, %s212
      %p214 = scmp.eq.s32.totalorder %s31, 0
      %p215 = por %p213, %p214
      %s216 = ssub.s32 %s32, %s44
      %p217 = scmp.eq.s32.totalorder %s216, 0
      %s219 = sadd.s32 %s218, 1
      %s220 = scalar_select %p217, %s218, %s219
      %p223 = pneg %p217
      %p224 = scmp.eq.s32.totalorder %s25, 5
      %p225 = por %p223, %p224
      %p226 = scmp.ne.s32.totalorder %s218, %s221
      %p227 = scmp.eq.s32.totalorder %s25, 0
      %p228 = por %p226, %p227
      %p229 = scmp.ne.s32.totalorder %s218, %s221
      %p230 = scmp.eq.s32.totalorder %s30, 5
      %p231 = por %p229, %p230
      %p232 = scmp.ne.s32.totalorder %s221, %s222
      %p233 = scmp.eq.s32.totalorder %s30, 0
      %p234 = por %p232, %p233
      %p235 = scmp.ne.s32.totalorder %s221, %s222
      %p236 = scmp.eq.s32.totalorder %s31, 5
      %p237 = por %p235, %p236
      %p239 = scmp.ne.s32.totalorder %s222, %s238
      %p240 = scmp.eq.s32.totalorder %s31, 0
      %p241 = por %p239, %p240
      %p242 = scmp.le.s32.totalorder 1, %s25
      %p243 = scmp.lt.s32.totalorder %s25, 7
      %p244 = pnand %p242, %p243
      %p245 = pneg %p244
      // Predicated region
      $region9: #{tpu_custom_call.1} parent=5 // pred_check
        _
      $region10: #{tpu_custom_call.1} parent=5 // pred_check_branch
        %247 = sbr.rel (%p244) target = $region12
      $region11: #{tpu_custom_call.1} parent=5 // pred_region
        %s248 = ssub.s32 %s25, 1
        // Predicated region
        $region13: #{tpu_custom_call.1} parent=11 // pred_check
          %p249 = pneg %p58
        $region14: #{tpu_custom_call.1} parent=11 // pred_check_branch
          %251 = sbr.rel (%p249) target = $region16
        $region15: #{tpu_custom_call.1} parent=11 // pred_region
          _
        $region16: #{tpu_custom_call.1} parent=11 // pred_fallthru
          _
      $region12: #{tpu_custom_call.1} parent=5 // pred_fallthru
        _
      %p252 = scmp.lt.s32.totalorder %s25, 6
      // Predicated region
      $region17: #{tpu_custom_call.1} parent=5 // pred_check
        %p253 = pneg %p252
      $region18: #{tpu_custom_call.1} parent=5 // pred_check_branch
        %255 = sbr.rel (%p253) target = $region20
      $region19: #{tpu_custom_call.1} parent=5 // pred_region
        // Predicated region
        $region21: #{tpu_custom_call.1} parent=19 // pred_check
          %p256 = pneg %p78
        $region22: #{tpu_custom_call.1} parent=19 // pred_check_branch
          %258 = sbr.rel (%p256) target = $region24
        $region23: #{tpu_custom_call.1} parent=19 // pred_region
          %p259 = scmp.lt.s32.totalorder %s32, 1
          %s260 = scalar_select %p259, %s32, 1
          %s261 = smul.addr %s260, 2
          %s262 = scalar_lea.vmem %s1, %s261
        $region24: #{tpu_custom_call.1} parent=19 // pred_fallthru
          _
        // Predicated region
        $region25: #{tpu_custom_call.1} parent=19 // pred_check
          %p263 = pneg %p114
        $region26: #{tpu_custom_call.1} parent=19 // pred_check_branch
          %265 = sbr.rel (%p263) target = $region28
        $region27: #{tpu_custom_call.1} parent=19 // pred_region
          %s266 = sand.u32 %s104, 1
          %s267 = scalar_lea.sflag [#allocation4], %s266
          %s268 = sand.u32 %s104, 1
          %s269 = smul.addr %s268, 24
          %s270 = scalar_lea.vmem [#allocation3], %s269
          %s271 = smul.u32 %s33, 2
          %s272 = ssub.s32 2, %s271
          %s273 = smul.u32 %s32, %s272
          %s274 = sadd.s32 %s33, %s273
          %s275 = smul.u32 4, %s274
          %s277 = ssub.s32 384, 384
          %278 = vsyncadd %s267, %s277
          %s279 = smul.addr %s275, 3
          %s280 = smul.addr %s32, 36
          %s281 = sadd.s32 %s279, %s280
          %s282 = smul.addr %s281, 32
          %s283 = scalar_lea.hbm %s2, %s282
          %s284 = sshll.u32 %s270, 4
          %s285 = int_to_ptr.vmem [resolvable:$true] %s284
          %290 = dma.hbm_to_vmem [thread:$0]  %s283, 384, %s285, %s267, 96, 96, 6
        $region28: #{tpu_custom_call.1} parent=19 // pred_fallthru
          _
        // Predicated region
        $region29: #{tpu_custom_call.1} parent=19 // pred_check
          %p291 = pneg %p140
        $region30: #{tpu_custom_call.1} parent=19 // pred_check_branch
          %293 = sbr.rel (%p291) target = $region32
        $region31: #{tpu_custom_call.1} parent=19 // pred_region
          %s294 = sand.u32 %s130, 1
          %s295 = scalar_lea.sflag [#allocation7], %s294
          %s296 = sand.u32 %s130, 1
          %s297 = smul.addr %s296, 384
          %s298 = scalar_lea.vmem [#allocation6], %s297
          %s300 = ssub.s32 6144, 6144
          %301 = vsyncadd %s295, %s300
          %s302 = smul.addr %s32, 48
          %s303 = smul.addr %s302, 128
          %s304 = scalar_lea.hbm %s3, %s303
          %s305 = sshll.u32 %s298, 4
          %s306 = int_to_ptr.vmem [resolvable:$true] %s305
          %311 = dma.hbm_to_vmem [thread:$0]  %s304, 6144, %s306, %s295, 384, 384, 24
        $region32: #{tpu_custom_call.1} parent=19 // pred_fallthru
          _
        // Predicated region
        $region33: #{tpu_custom_call.1} parent=19 // pred_check
          %p312 = pneg %p166
        $region34: #{tpu_custom_call.1} parent=19 // pred_check_branch
          %314 = sbr.rel (%p312) target = $region36
        $region35: #{tpu_custom_call.1} parent=19 // pred_region
          %p315 = scmp.lt.s32.totalorder %s32, 1
          %s316 = scalar_select %p315, %s32, 1
          %s317 = smul.addr %s316, 3
          %s318 = scalar_lea.vmem %s4, %s317
        $region36: #{tpu_custom_call.1} parent=19 // pred_fallthru
          _
      $region20: #{tpu_custom_call.1} parent=5 // pred_fallthru
        _
      %p319 = scmp.le.s32.totalorder 1, %s25
      %p320 = scmp.lt.s32.totalorder %s25, 7
      %p321 = pnand %p319, %p320
      %p322 = pneg %p321
      // Predicated region
      $region37: #{tpu_custom_call.1} parent=5 // pred_check
        _
      $region38: #{tpu_custom_call.1} parent=5 // pred_check_branch
        %324 = sbr.rel (%p321) target = $region40
      $region39: #{tpu_custom_call.1} parent=5 // pred_region
        %s325 = ssub.s32 %s25, 1
        %s326 = sand.u32 %s107, 1
        %s327 = scalar_lea.sflag [#allocation4], %s326
        %s328 = sand.u32 %s107, 1
        %s329 = smul.addr %s328, 24
        %s330 = scalar_lea.vmem [#allocation3], %s329
        // Predicated region
        $region41: #{tpu_custom_call.1} parent=39 // pred_check
          %p331 = pneg %p120
        $region42: #{tpu_custom_call.1} parent=39 // pred_check_branch
          %333 = sbr.rel (%p331) target = $region44
        $region43: #{tpu_custom_call.1} parent=39 // pred_region
          %334 = dma.done %s327, 384
        $region44: #{tpu_custom_call.1} parent=39 // pred_fallthru
          _
        %s335 = sand.u32 %s133, 1
        %s336 = scalar_lea.sflag [#allocation7], %s335
        %s337 = sand.u32 %s133, 1
        %s338 = smul.addr %s337, 384
        %s339 = scalar_lea.vmem [#allocation6], %s338
        // Predicated region
        $region45: #{tpu_custom_call.1} parent=39 // pred_check
          %p340 = pneg %p146
        $region46: #{tpu_custom_call.1} parent=39 // pred_check_branch
          %342 = sbr.rel (%p340) target = $region48
        $region47: #{tpu_custom_call.1} parent=39 // pred_region
          %343 = dma.done %s336, 6144
        $region48: #{tpu_custom_call.1} parent=39 // pred_fallthru
          _
        %p344 = pneg %p58
        %p345 = pneg %p55
        %p346 = scmp.lt.s32.totalorder %s34, 1
        %s347 = scalar_select %p346, %s34, 1
        %s348 = smul.addr %s347, 2
        %s349 = scalar_lea.vmem %s1, %s348
        %p350 = pneg %p84
        %p351 = pneg %p81
        %s352 = sand.u32 %s107, 1
        %s353 = scalar_lea.sflag [#allocation4], %s352
        %s354 = sand.u32 %s107, 1
        %s355 = smul.addr %s354, 24
        %s356 = scalar_lea.vmem [#allocation3], %s355
        %p357 = pneg %p120
        %p358 = pneg %p117
        %s359 = sand.u32 %s133, 1
        %s360 = scalar_lea.sflag [#allocation7], %s359
        %s361 = sand.u32 %s133, 1
        %s362 = smul.addr %s361, 384
        %s363 = scalar_lea.vmem [#allocation6], %s362
        %p364 = pneg %p146
        %p365 = pneg %p143
        %p366 = scmp.lt.s32.totalorder %s34, 1
        %s367 = scalar_select %p366, %s34, 1
        %s368 = smul.addr %s367, 3
        %s369 = scalar_lea.vmem %s4, %s368
        %p370 = pneg %p172
        %p371 = pneg %p169
        %p372 = pneg %p208
        %p373 = pneg %p205
        %s374 = sand.u32 %s195, 1
        %s375 = scalar_lea.sflag [#allocation5], %s374
        %s376 = sand.u32 %s195, 1
        %s377 = smul.addr %s376, 8
        %s378 = scalar_lea.vmem [#allocation8], %s377
        %p379 = pneg %p234
        %p380 = pneg %p231
        %s381 = sand.u32 %s221, 1
        %s382 = scalar_lea.sflag [#allocation10], %s381
        %s383 = sand.u32 %s221, 1
        %s384 = smul.addr %s383, 2
        %s385 = scalar_lea.vmem [#allocation9], %s384
        %p386 = scmp.lt.s32.totalorder %s34, 1
        %s387 = scalar_select %p386, %s34, 1
        %s388 = smul.addr %s387, 2
        %s389 = scalar_lea.vmem %s1, %s388
        %s390 = smul.u32 %s35, 2
        %s391 = ssub.s32 2, %s390
        %s392 = smul.u32 %s34, %s391
        %s393 = sadd.s32 %s35, %s392
        %s394 = smul.u32 4, %s393
        %p395 = scmp.lt.s32.totalorder %s34, 1
        %s396 = scalar_select %p395, %s34, 1
        %s397 = smul.addr %s396, 3
        %s398 = scalar_lea.vmem %s4, %s397
        %s399 = smul.u32 %s35, 2
        %s400 = ssub.s32 2, %s399
        %s401 = smul.u32 %s34, %s400
        %s402 = sadd.s32 %s35, %s401
        %s403 = smul.u32 4, %s402
        %p404 = scmp.eq.s32.totalorder %s35, 0
        // Predicated region
        $region49: #{tpu_custom_call.1} parent=39 // pred_check
          %p405 = pneg %p404
        $region50: #{tpu_custom_call.1} parent=39 // pred_check_branch
          %407 = sbr.rel (%p405) target = $region52
        $region51: #{tpu_custom_call.1} parent=39 // pred_region
          %v408 = vld [vmem:[%s389] sm:$0x3]
          %409 = vst [vmem:[#allocation2] sm:$0x3] %v408
        $region52: #{tpu_custom_call.1} parent=39 // pred_fallthru
          _
        %v410 = vld [vmem:[%s0] sm:$0x3]
        %v411 = vld [vmem:[%s339] sm:$0xff]
        %v412 = vld [vmem:[%s339 + $0x8] sm:$0xff]
        %v413 = vld [vmem:[%s339 + $0x10] sm:$0xff]
        %v414 = vld [vmem:[%s339 + $0x18] sm:$0xff]
        %v415 = vld [vmem:[%s339 + $0x20] sm:$0xff]
        %v416 = vld [vmem:[%s339 + $0x28] sm:$0xff]
        %v417 = vld [vmem:[%s339 + $0x30] sm:$0xff]
        %v418 = vld [vmem:[%s339 + $0x38] sm:$0xff]
        %v419 = vld [vmem:[%s339 + $0x40] sm:$0xff]
        %v420 = vld [vmem:[%s339 + $0x48] sm:$0xff]
        %v421 = vld [vmem:[%s339 + $0x50] sm:$0xff]
        %v422 = vld [vmem:[%s339 + $0x58] sm:$0xff]
        %v423 = vld [vmem:[%s339 + $0x60] sm:$0xff]
        %v424 = vld [vmem:[%s339 + $0x68] sm:$0xff]
        %v425 = vld [vmem:[%s339 + $0x70] sm:$0xff]
        %v426 = vld [vmem:[%s339 + $0x78] sm:$0xff]
        %v427 = vld [vmem:[%s339 + $0x80] sm:$0xff]
        %v428 = vld [vmem:[%s339 + $0x88] sm:$0xff]
        %v429 = vld [vmem:[%s339 + $0x90] sm:$0xff]
        %v430 = vld [vmem:[%s339 + $0x98] sm:$0xff]
        %v431 = vld [vmem:[%s339 + $0xa0] sm:$0xff]
        %v432 = vld [vmem:[%s339 + $0xa8] sm:$0xff]
        %v433 = vld [vmem:[%s339 + $0xb0] sm:$0xff]
        %v434 = vld [vmem:[%s339 + $0xb8] sm:$0xff]
        %v435 = vld [vmem:[%s339 + $0xc0] sm:$0xff]
        %v436 = vld [vmem:[%s339 + $0xc8] sm:$0xff]
        %v437 = vld [vmem:[%s339 + $0xd0] sm:$0xff]
        %v438 = vld [vmem:[%s339 + $0xd8] sm:$0xff]
        %v439 = vld [vmem:[%s339 + $0xe0] sm:$0xff]
        %v440 = vld [vmem:[%s339 + $0xe8] sm:$0xff]
        %v441 = vld [vmem:[%s339 + $0xf0] sm:$0xff]
        %v442 = vld [vmem:[%s339 + $0xf8] sm:$0xff]
        %v443 = vld [vmem:[%s339 + $0x100] sm:$0xff]
        %v444 = vld [vmem:[%s339 + $0x108] sm:$0xff]
        %v445 = vld [vmem:[%s339 + $0x110] sm:$0xff]
        %v446 = vld [vmem:[%s339 + $0x118] sm:$0xff]
        %v447 = vld [vmem:[%s339 + $0x120] sm:$0xff]
        %v448 = vld [vmem:[%s339 + $0x128] sm:$0xff]
        %v449 = vld [vmem:[%s339 + $0x130] sm:$0xff]
        %v450 = vld [vmem:[%s339 + $0x138] sm:$0xff]
        %v451 = vld [vmem:[%s339 + $0x140] sm:$0xff]
        %v452 = vld [vmem:[%s339 + $0x148] sm:$0xff]
        %v453 = vld [vmem:[%s339 + $0x150] sm:$0xff]
        %v454 = vld [vmem:[%s339 + $0x158] sm:$0xff]
        %v455 = vld [vmem:[%s339 + $0x160] sm:$0xff]
        %v456 = vld [vmem:[%s339 + $0x168] sm:$0xff]
        %v457 = vld [vmem:[%s339 + $0x170] sm:$0xff]
        %v458 = vld [vmem:[%s339 + $0x178] sm:$0xff]
        %v459 = vld [vmem:[%s398] sm:$0x7]
        %s460 = smul.u32 %s35, 2
        %s461 = ssub.s32 2, %s460
        %s462 = smul.u32 %s34, %s461
        %s463 = sadd.s32 %s35, %s462
        %v464 = vld [vmem:[#allocation2] sm:$0x3]
        %s465 = smul.u32 %s34, 3
        %s466 = smul.u32 %s463, 4
        %s467 = sadd.s32 %s466, %s465
        %s468 = smul.u32 %s465, 3
        %s469 = smul.addr %s468, 2
        %s470 = scalar_lea.vmem %s330, %s469 [#allocation3]
        %v471 = vld [vmem:[%s470] sm:$0x3f]
        %v473 = vlaneseq
        %v474 = vshrl.u32 %v473, 7
        %v475 = vsub.s32 0, %v474
        %v476 = vrot.slane %v459, %v475
        %v477 = vlaneseq
        %v478 = vshrl.u32 %v477, 7
        %v479 = vsub.s32 1, %v478
        %v480 = vrot.slane %v459, %v479
        %v481 = vlaneseq
        %v482 = vshrl.u32 %v481, 7
        %v483 = vsub.s32 2, %v482
        %v484 = vrot.slane %v459, %v483
        %488 = vmatprep.subr.mxu0 %v457
        %489 = vmatpush1.msra.mxu0 %v456
        %490 = vmatprep.subr.mxu0 %v454
        %491 = vmatpush1.msra.mxu0 %v453
        %492 = vmatprep.subr.mxu0 %v451
        %493 = vmatpush1.msra.mxu0 %v450
        %494 = vmatprep.subr.mxu0 %v448
        %495 = vmatpush1.msra.mxu0 %v447
        %496 = vmatprep.subr.mxu0 %v445
        %497 = vmatpush1.msra.mxu0 %v444
        %498 = vmatprep.subr.mxu0 %v442
        %499 = vmatpush1.msra.mxu0 %v441
        %500 = vmatprep.subr.mxu0 %v439
        %501 = vmatpush1.msra.mxu0 %v438
        %502 = vmatprep.subr.mxu0 %v436
        %503 = vmatpush1.msra.mxu0 %v435
        %504 = vmatprep.subr.mxu0 %v433
        %505 = vmatpush1.msra.mxu0 %v432
        %506 = vmatprep.subr.mxu0 %v430
        %507 = vmatpush1.msra.mxu0 %v429
        %508 = vmatprep.subr.mxu0 %v427
        %509 = vmatpush1.msra.mxu0 %v426
        %510 = vmatprep.subr.mxu0 %v424
        %511 = vmatpush1.msra.mxu0 %v423
        %512 = vmatprep.subr.mxu0 %v421
        %513 = vmatpush1.msra.mxu0 %v420
        %514 = vmatprep.subr.mxu0 %v418
        %515 = vmatpush1.msra.mxu0 %v417
        %516 = vmatprep.subr.mxu0 %v415
        %517 = vmatpush1.msra.mxu0 %v414
        %518 = vmatprep.subr.mxu0 %v412
        %519 = vmatpush1.msra.mxu0 %v411
        %520 = vmatprep.subr.mxu0 0.0
        %521 = vmatpush2.msra.mxu0 0.0
        %522 = vmatprep.subr.mxu0 0.0
        %523 = vmatpush2.msra.mxu0 0.0
        %524 = vmatprep.subr.mxu0 0.0
        %525 = vmatpush2.msra.mxu0 0.0
        %526 = vmatprep.subr.mxu0 0.0
        %527 = vmatpush2.msra.mxu0 0.0
        %528 = vmatprep.subr.mxu0 0.0
        %529 = vmatpush2.msra.mxu0 0.0
        %530 = vmatprep.subr.mxu0 0.0
        %531 = vmatpush2.msra.mxu0 0.0
        %532 = vmatprep.subr.mxu0 0.0
        %533 = vmatpush2.msra.mxu0 0.0
        %534 = vmatprep.subr.mxu0 0.0
        %535 = vmatpush2.msra.mxu0 0.0
        %536 = vmatprep.subr.mxu0 0.0
        %537 = vmatpush2.msra.mxu0 0.0
        %538 = vmatprep.subr.mxu0 0.0
        %539 = vmatpush2.msra.mxu0 0.0
        %540 = vmatprep.subr.mxu0 0.0
        %541 = vmatpush2.msra.mxu0 0.0
        %542 = vmatprep.subr.mxu0 0.0
        %543 = vmatpush2.msra.mxu0 0.0
        %544 = vmatprep.subr.mxu0 0.0
        %545 = vmatpush2.msra.mxu0 0.0
        %546 = vmatprep.subr.mxu0 0.0
        %547 = vmatpush2.msra.mxu0 0.0
        %548 = vmatprep.subr.mxu0 0.0
        %549 = vmatpush2.msra.mxu0 0.0
        %550 = vmatprep.subr.mxu0 0.0
        %551 = vmatpush2.msra.mxu0 0.0
        %552 = vmatprep.mubr.f32.mxu0 0.0
        %553 = vmatmul.mubr.f32.gmra.mxu0 %v464
        %v554 = vpop.f32.mrf.mxu0
        %v555 = vadd.f32 %v476, %v554
        %v556 = vpop.f32.mrf.mxu0
        %v557 = vadd.f32 %v480, %v556
        %558 = vdwg.mxu0
        %559 = vmatprep.subr.mxu0 0.0
        %560 = vmatpush1.msra.mxu0 %v458
        %561 = vmatprep.subr.mxu0 0.0
        %562 = vmatpush1.msra.mxu0 %v455
        %563 = vmatprep.subr.mxu0 0.0
        %564 = vmatpush1.msra.mxu0 %v452
        %565 = vmatprep.subr.mxu0 0.0
        %566 = vmatpush1.msra.mxu0 %v449
        %567 = vmatprep.subr.mxu0 0.0
        %568 = vmatpush1.msra.mxu0 %v446
        %569 = vmatprep.subr.mxu0 0.0
        %570 = vmatpush1.msra.mxu0 %v443
        %571 = vmatprep.subr.mxu0 0.0
        %572 = vmatpush1.msra.mxu0 %v440
        %573 = vmatprep.subr.mxu0 0.0
        %574 = vmatpush1.msra.mxu0 %v437
        %575 = vmatprep.subr.mxu0 0.0
        %576 = vmatpush1.msra.mxu0 %v434
        %577 = vmatprep.subr.mxu0 0.0
        %578 = vmatpush1.msra.mxu0 %v431
        %579 = vmatprep.subr.mxu0 0.0
        %580 = vmatpush1.msra.mxu0 %v428
        %581 = vmatprep.subr.mxu0 0.0
        %582 = vmatpush1.msra.mxu0 %v425
        %583 = vmatprep.subr.mxu0 0.0
        %584 = vmatpush1.msra.mxu0 %v422
        %585 = vmatprep.subr.mxu0 0.0
        %586 = vmatpush1.msra.mxu0 %v419
        %587 = vmatprep.subr.mxu0 0.0
        %588 = vmatpush1.msra.mxu0 %v416
        %589 = vmatprep.subr.mxu0 0.0
        %590 = vmatpush1.msra.mxu0 %v413
        %591 = vmatprep.subr.mxu0 0.0
        %592 = vmatpush2.msra.mxu0 0.0
        %593 = vmatprep.subr.mxu0 0.0
        %594 = vmatpush2.msra.mxu0 0.0
        %595 = vmatprep.subr.mxu0 0.0
        %596 = vmatpush2.msra.mxu0 0.0
        %597 = vmatprep.subr.mxu0 0.0
        %598 = vmatpush2.msra.mxu0 0.0
        %599 = vmatprep.subr.mxu0 0.0
        %600 = vmatpush2.msra.mxu0 0.0
        %601 = vmatprep.subr.mxu0 0.0
        %602 = vmatpush2.msra.mxu0 0.0
        %603 = vmatprep.subr.mxu0 0.0
        %604 = vmatpush2.msra.mxu0 0.0
        %605 = vmatprep.subr.mxu0 0.0
        %606 = vmatpush2.msra.mxu0 0.0
        %607 = vmatprep.subr.mxu0 0.0
        %608 = vmatpush2.msra.mxu0 0.0
        %609 = vmatprep.subr.mxu0 0.0
        %610 = vmatpush2.msra.mxu0 0.0
        %611 = vmatprep.subr.mxu0 0.0
        %612 = vmatpush2.msra.mxu0 0.0
        %613 = vmatprep.subr.mxu0 0.0
        %614 = vmatpush2.msra.mxu0 0.0
        %615 = vmatprep.subr.mxu0 0.0
        %616 = vmatpush2.msra.mxu0 0.0
        %617 = vmatprep.subr.mxu0 0.0
        %618 = vmatpush2.msra.mxu0 0.0
        %619 = vmatprep.subr.mxu0 0.0
        %620 = vmatpush2.msra.mxu0 0.0
        %621 = vmatprep.subr.mxu0 0.0
        %622 = vmatpush2.msra.mxu0 0.0
        %623 = vmatprep.mubr.f32.mxu0 0.0
        %624 = vmatmul.mubr.f32.gmra.mxu0 %v464
        %v625 = vpop.f32.mrf.mxu0
        %v626 = vadd.f32 %v484, %v625
        %v627 = vpop.f32.mrf.mxu0
        %628 = vdwg.mxu0
        %v629 = vadd.f32 %v471, %v555
        %v630 = vxor.u32 %v629, 2147483648
        %v631 = vmul.f32 %v630, 1.442695
        %v632 = vpow.pop %v631
        %v633 = vadd.f32 %v632, 1.0
        %v634 = vrcp.pop %v633
        %v635 = vmul.f32 1.0, %v634
        %v637 = vrot.slane %v471, 2
        %v639 = vadd.f32 %v637, %v557
        %v640 = vxor.u32 %v639, 2147483648
        %v641 = vmul.f32 %v640, 1.442695
        %v642 = vpow.pop %v641
        %v643 = vadd.f32 %v642, 1.0
        %v644 = vrcp.pop %v643
        %v645 = vmul.f32 1.0, %v644
        %v646 = vmul.f32 %v635, %v626
        %v647 = vrot.slane %v471, 4
        %v649 = vadd.f32 %v647, %v646
        %v650 = vtanh.pop %v649
        %v651 = vsub.f32 1.0, %v645
        %v652 = vmul.f32 %v651, %v650
        %v653 = vmul.f32 %v645, %v464
        %v654 = vadd.f32 %v652, %v653
        %v655 = vstv %s467
        %vm656 = vcmp.gt.s32.totalorder %v410, %v655
        %v657 = vsel %vm656, 1, 0
        %v658 = vcvt.s32.f32 %v657
        %660 = vset.pattern.permute.xlu0 0
        %661 = vperm.xlu0 %660, %v658
        %v662 = vpop.permute.xlu0 %661
        %v664 = vmul.f32 %v662, %v654
        %v665 = vsub.f32 1.0, %v658
        %667 = vset.pattern.permute.xlu0 0
        %668 = vperm.xlu0 %667, %v665
        %v669 = vpop.permute.xlu0 %668
        %v671 = vmul.f32 %v669, %v464
        %v672 = vadd.f32 %v664, %v671
        %v673 = vmul.f32 %v662, %v672
        %s674 = smul.u32 %s465, 2
        %s675 = scalar_lea.vmem %s378, %s674 [#allocation8]
        %676 = vst [vmem:[%s675] sm:$0x3] %v673
        %s677 = sadd.s32 %s34, 1
        %s678 = sadd.s32 %s466, %s677
        %s679 = smul.u32 %s677, 3
        %s680 = smul.addr %s679, 2
        %s681 = scalar_lea.vmem %s330, %s680 [#allocation3]
        %v682 = vld [vmem:[%s681] sm:$0x3f]
        %683 = vmatprep.subr.mxu0 %v457
        %684 = vmatpush1.msra.mxu0 %v456
        %685 = vmatprep.subr.mxu0 %v454
        %686 = vmatpush1.msra.mxu0 %v453
        %687 = vmatprep.subr.mxu0 %v451
        %688 = vmatpush1.msra.mxu0 %v450
        %689 = vmatprep.subr.mxu0 %v448
        %690 = vmatpush1.msra.mxu0 %v447
        %691 = vmatprep.subr.mxu0 %v445
        %692 = vmatpush1.msra.mxu0 %v444
        %693 = vmatprep.subr.mxu0 %v442
        %694 = vmatpush1.msra.mxu0 %v441
        %695 = vmatprep.subr.mxu0 %v439
        %696 = vmatpush1.msra.mxu0 %v438
        %697 = vmatprep.subr.mxu0 %v436
        %698 = vmatpush1.msra.mxu0 %v435
        %699 = vmatprep.subr.mxu0 %v433
        %700 = vmatpush1.msra.mxu0 %v432
        %701 = vmatprep.subr.mxu0 %v430
        %702 = vmatpush1.msra.mxu0 %v429
        %703 = vmatprep.subr.mxu0 %v427
        %704 = vmatpush1.msra.mxu0 %v426
        %705 = vmatprep.subr.mxu0 %v424
        %706 = vmatpush1.msra.mxu0 %v423
        %707 = vmatprep.subr.mxu0 %v421
        %708 = vmatpush1.msra.mxu0 %v420
        %709 = vmatprep.subr.mxu0 %v418
        %710 = vmatpush1.msra.mxu0 %v417
        %711 = vmatprep.subr.mxu0 %v415
        %712 = vmatpush1.msra.mxu0 %v414
        %713 = vmatprep.subr.mxu0 %v412
        %714 = vmatpush1.msra.mxu0 %v411
        %715 = vmatprep.subr.mxu0 0.0
        %716 = vmatpush2.msra.mxu0 0.0
        %717 = vmatprep.subr.mxu0 0.0
        %718 = vmatpush2.msra.mxu0 0.0
        %719 = vmatprep.subr.mxu0 0.0
        %720 = vmatpush2.msra.mxu0 0.0
        %721 = vmatprep.subr.mxu0 0.0
        %722 = vmatpush2.msra.mxu0 0.0
        %723 = vmatprep.subr.mxu0 0.0
        %724 = vmatpush2.msra.mxu0 0.0
        %725 = vmatprep.subr.mxu0 0.0
        %726 = vmatpush2.msra.mxu0 0.0
        %727 = vmatprep.subr.mxu0 0.0
        %728 = vmatpush2.msra.mxu0 0.0
        %729 = vmatprep.subr.mxu0 0.0
        %730 = vmatpush2.msra.mxu0 0.0
        %731 = vmatprep.subr.mxu0 0.0
        %732 = vmatpush2.msra.mxu0 0.0
        %733 = vmatprep.subr.mxu0 0.0
        %734 = vmatpush2.msra.mxu0 0.0
        %735 = vmatprep.subr.mxu0 0.0
        %736 = vmatpush2.msra.mxu0 0.0
        %737 = vmatprep.subr.mxu0 0.0
        %738 = vmatpush2.msra.mxu0 0.0
        %739 = vmatprep.subr.mxu0 0.0
        %740 = vmatpush2.msra.mxu0 0.0
        %741 = vmatprep.subr.mxu0 0.0
        %742 = vmatpush2.msra.mxu0 0.0
        %743 = vmatprep.subr.mxu0 0.0
        %744 = vmatpush2.msra.mxu0 0.0
        %745 = vmatprep.subr.mxu0 0.0
        %746 = vmatpush2.msra.mxu0 0.0
        %747 = vmatprep.mubr.f32.mxu0 0.0
        %748 = vmatmul.mubr.f32.gmra.mxu0 %v672
        %v749 = vpop.f32.mrf.mxu0
        %v750 = vadd.f32 %v476, %v749
        %v751 = vpop.f32.mrf.mxu0
        %v752 = vadd.f32 %v480, %v751
        %753 = vdwg.mxu0
        %754 = vmatprep.subr.mxu0 0.0
        %755 = vmatpush1.msra.mxu0 %v458
        %756 = vmatprep.subr.mxu0 0.0
        %757 = vmatpush1.msra.mxu0 %v455
        %758 = vmatprep.subr.mxu0 0.0
        %759 = vmatpush1.msra.mxu0 %v452
        %760 = vmatprep.subr.mxu0 0.0
        %761 = vmatpush1.msra.mxu0 %v449
        %762 = vmatprep.subr.mxu0 0.0
        %763 = vmatpush1.msra.mxu0 %v446
        %764 = vmatprep.subr.mxu0 0.0
        %765 = vmatpush1.msra.mxu0 %v443
        %766 = vmatprep.subr.mxu0 0.0
        %767 = vmatpush1.msra.mxu0 %v440
        %768 = vmatprep.subr.mxu0 0.0
        %769 = vmatpush1.msra.mxu0 %v437
        %770 = vmatprep.subr.mxu0 0.0
        %771 = vmatpush1.msra.mxu0 %v434
        %772 = vmatprep.subr.mxu0 0.0
        %773 = vmatpush1.msra.mxu0 %v431
        %774 = vmatprep.subr.mxu0 0.0
        %775 = vmatpush1.msra.mxu0 %v428
        %776 = vmatprep.subr.mxu0 0.0
        %777 = vmatpush1.msra.mxu0 %v425
        %778 = vmatprep.subr.mxu0 0.0
        %779 = vmatpush1.msra.mxu0 %v422
        %780 = vmatprep.subr.mxu0 0.0
        %781 = vmatpush1.msra.mxu0 %v419
        %782 = vmatprep.subr.mxu0 0.0
        %783 = vmatpush1.msra.mxu0 %v416
        %784 = vmatprep.subr.mxu0 0.0
        %785 = vmatpush1.msra.mxu0 %v413
        %786 = vmatprep.subr.mxu0 0.0
        %787 = vmatpush2.msra.mxu0 0.0
        %788 = vmatprep.subr.mxu0 0.0
        %789 = vmatpush2.msra.mxu0 0.0
        %790 = vmatprep.subr.mxu0 0.0
        %791 = vmatpush2.msra.mxu0 0.0
        %792 = vmatprep.subr.mxu0 0.0
        %793 = vmatpush2.msra.mxu0 0.0
        %794 = vmatprep.subr.mxu0 0.0
        %795 = vmatpush2.msra.mxu0 0.0
        %796 = vmatprep.subr.mxu0 0.0
        %797 = vmatpush2.msra.mxu0 0.0
        %798 = vmatprep.subr.mxu0 0.0
        %799 = vmatpush2.msra.mxu0 0.0
        %800 = vmatprep.subr.mxu0 0.0
        %801 = vmatpush2.msra.mxu0 0.0
        %802 = vmatprep.subr.mxu0 0.0
        %803 = vmatpush2.msra.mxu0 0.0
        %804 = vmatprep.subr.mxu0 0.0
        %805 = vmatpush2.msra.mxu0 0.0
        %806 = vmatprep.subr.mxu0 0.0
        %807 = vmatpush2.msra.mxu0 0.0
        %808 = vmatprep.subr.mxu0 0.0
        %809 = vmatpush2.msra.mxu0 0.0
        %810 = vmatprep.subr.mxu0 0.0
        %811 = vmatpush2.msra.mxu0 0.0
        %812 = vmatprep.subr.mxu0 0.0
        %813 = vmatpush2.msra.mxu0 0.0
        %814 = vmatprep.subr.mxu0 0.0
        %815 = vmatpush2.msra.mxu0 0.0
        %816 = vmatprep.subr.mxu0 0.0
        %817 = vmatpush2.msra.mxu0 0.0
        %818 = vmatprep.mubr.f32.mxu0 0.0
        %819 = vmatmul.mubr.f32.gmra.mxu0 %v672
        %v820 = vpop.f32.mrf.mxu0
        %v821 = vadd.f32 %v484, %v820
        %v822 = vpop.f32.mrf.mxu0
        %823 = vdwg.mxu0
        %v824 = vadd.f32 %v682, %v750
        %v825 = vxor.u32 %v824, 2147483648
        %v826 = vmul.f32 %v825, 1.442695
        %v827 = vpow.pop %v826
        %v828 = vadd.f32 %v827, 1.0
        %v829 = vrcp.pop %v828
        %v830 = vmul.f32 1.0, %v829
        %v832 = vrot.slane %v682, 2
        %v834 = vadd.f32 %v832, %v752
        %v835 = vxor.u32 %v834, 2147483648
        %v836 = vmul.f32 %v835, 1.442695
        %v837 = vpow.pop %v836
        %v838 = vadd.f32 %v837, 1.0
        %v839 = vrcp.pop %v838
        %v840 = vmul.f32 1.0, %v839
        %v841 = vmul.f32 %v830, %v821
        %v842 = vrot.slane %v682, 4
        %v844 = vadd.f32 %v842, %v841
        %v845 = vtanh.pop %v844
        %v846 = vsub.f32 1.0, %v840
        %v847 = vmul.f32 %v846, %v845
        %v848 = vmul.f32 %v840, %v672
        %v849 = vadd.f32 %v847, %v848
        %v850 = vstv %s678
        %vm851 = vcmp.gt.s32.totalorder %v410, %v850
        %v852 = vsel %vm851, 1, 0
        %v853 = vcvt.s32.f32 %v852
        %855 = vset.pattern.permute.xlu0 0
        %856 = vperm.xlu0 %855, %v853
        %v857 = vpop.permute.xlu0 %856
        %v859 = vmul.f32 %v857, %v849
        %v860 = vsub.f32 1.0, %v853
        %862 = vset.pattern.permute.xlu0 0
        %863 = vperm.xlu0 %862, %v860
        %v864 = vpop.permute.xlu0 %863
        %v866 = vmul.f32 %v864, %v672
        %v867 = vadd.f32 %v859, %v866
        %v868 = vmul.f32 %v857, %v867
        %s869 = smul.u32 %s677, 2
        %s870 = scalar_lea.vmem %s378, %s869 [#allocation8]
        %871 = vst [vmem:[%s870] sm:$0x3] %v868
        %s872 = ssub.s32 2, %s34
        %s873 = sadd.s32 %s466, %s872
        %s874 = smul.u32 %s872, 3
        %s875 = smul.addr %s874, 2
        %s876 = scalar_lea.vmem %s330, %s875 [#allocation3]
        %v877 = vld [vmem:[%s876] sm:$0x3f]
        %878 = vmatprep.subr.mxu0 %v457
        %879 = vmatpush1.msra.mxu0 %v456
        %880 = vmatprep.subr.mxu0 %v454
        %881 = vmatpush1.msra.mxu0 %v453
        %882 = vmatprep.subr.mxu0 %v451
        %883 = vmatpush1.msra.mxu0 %v450
        %884 = vmatprep.subr.mxu0 %v448
        %885 = vmatpush1.msra.mxu0 %v447
        %886 = vmatprep.subr.mxu0 %v445
        %887 = vmatpush1.msra.mxu0 %v444
        %888 = vmatprep.subr.mxu0 %v442
        %889 = vmatpush1.msra.mxu0 %v441
        %890 = vmatprep.subr.mxu0 %v439
        %891 = vmatpush1.msra.mxu0 %v438
        %892 = vmatprep.subr.mxu0 %v436
        %893 = vmatpush1.msra.mxu0 %v435
        %894 = vmatprep.subr.mxu0 %v433
        %895 = vmatpush1.msra.mxu0 %v432
        %896 = vmatprep.subr.mxu0 %v430
        %897 = vmatpush1.msra.mxu0 %v429
        %898 = vmatprep.subr.mxu0 %v427
        %899 = vmatpush1.msra.mxu0 %v426
        %900 = vmatprep.subr.mxu0 %v424
        %901 = vmatpush1.msra.mxu0 %v423
        %902 = vmatprep.subr.mxu0 %v421
        %903 = vmatpush1.msra.mxu0 %v420
        %904 = vmatprep.subr.mxu0 %v418
        %905 = vmatpush1.msra.mxu0 %v417
        %906 = vmatprep.subr.mxu0 %v415
        %907 = vmatpush1.msra.mxu0 %v414
        %908 = vmatprep.subr.mxu0 %v412
        %909 = vmatpush1.msra.mxu0 %v411
        %910 = vmatprep.subr.mxu0 0.0
        %911 = vmatpush2.msra.mxu0 0.0
        %912 = vmatprep.subr.mxu0 0.0
        %913 = vmatpush2.msra.mxu0 0.0
        %914 = vmatprep.subr.mxu0 0.0
        %915 = vmatpush2.msra.mxu0 0.0
        %916 = vmatprep.subr.mxu0 0.0
        %917 = vmatpush2.msra.mxu0 0.0
        %918 = vmatprep.subr.mxu0 0.0
        %919 = vmatpush2.msra.mxu0 0.0
        %920 = vmatprep.subr.mxu0 0.0
        %921 = vmatpush2.msra.mxu0 0.0
        %922 = vmatprep.subr.mxu0 0.0
        %923 = vmatpush2.msra.mxu0 0.0
        %924 = vmatprep.subr.mxu0 0.0
        %925 = vmatpush2.msra.mxu0 0.0
        %926 = vmatprep.subr.mxu0 0.0
        %927 = vmatpush2.msra.mxu0 0.0
        %928 = vmatprep.subr.mxu0 0.0
        %929 = vmatpush2.msra.mxu0 0.0
        %930 = vmatprep.subr.mxu0 0.0
        %931 = vmatpush2.msra.mxu0 0.0
        %932 = vmatprep.subr.mxu0 0.0
        %933 = vmatpush2.msra.mxu0 0.0
        %934 = vmatprep.subr.mxu0 0.0
        %935 = vmatpush2.msra.mxu0 0.0
        %936 = vmatprep.subr.mxu0 0.0
        %937 = vmatpush2.msra.mxu0 0.0
        %938 = vmatprep.subr.mxu0 0.0
        %939 = vmatpush2.msra.mxu0 0.0
        %940 = vmatprep.subr.mxu0 0.0
        %941 = vmatpush2.msra.mxu0 0.0
        %942 = vmatprep.mubr.f32.mxu0 0.0
        %943 = vmatmul.mubr.f32.gmra.mxu0 %v867
        %v944 = vpop.f32.mrf.mxu0
        %v945 = vadd.f32 %v476, %v944
        %v946 = vpop.f32.mrf.mxu0
        %v947 = vadd.f32 %v480, %v946
        %948 = vdwg.mxu0
        %949 = vmatprep.subr.mxu0 0.0
        %950 = vmatpush1.msra.mxu0 %v458
        %951 = vmatprep.subr.mxu0 0.0
        %952 = vmatpush1.msra.mxu0 %v455
        %953 = vmatprep.subr.mxu0 0.0
        %954 = vmatpush1.msra.mxu0 %v452
        %955 = vmatprep.subr.mxu0 0.0
        %956 = vmatpush1.msra.mxu0 %v449
        %957 = vmatprep.subr.mxu0 0.0
        %958 = vmatpush1.msra.mxu0 %v446
        %959 = vmatprep.subr.mxu0 0.0
        %960 = vmatpush1.msra.mxu0 %v443
        %961 = vmatprep.subr.mxu0 0.0
        %962 = vmatpush1.msra.mxu0 %v440
        %963 = vmatprep.subr.mxu0 0.0
        %964 = vmatpush1.msra.mxu0 %v437
        %965 = vmatprep.subr.mxu0 0.0
        %966 = vmatpush1.msra.mxu0 %v434
        %967 = vmatprep.subr.mxu0 0.0
        %968 = vmatpush1.msra.mxu0 %v431
        %969 = vmatprep.subr.mxu0 0.0
        %970 = vmatpush1.msra.mxu0 %v428
        %971 = vmatprep.subr.mxu0 0.0
        %972 = vmatpush1.msra.mxu0 %v425
        %973 = vmatprep.subr.mxu0 0.0
        %974 = vmatpush1.msra.mxu0 %v422
        %975 = vmatprep.subr.mxu0 0.0
        %976 = vmatpush1.msra.mxu0 %v419
        %977 = vmatprep.subr.mxu0 0.0
        %978 = vmatpush1.msra.mxu0 %v416
        %979 = vmatprep.subr.mxu0 0.0
        %980 = vmatpush1.msra.mxu0 %v413
        %981 = vmatprep.subr.mxu0 0.0
        %982 = vmatpush2.msra.mxu0 0.0
        %983 = vmatprep.subr.mxu0 0.0
        %984 = vmatpush2.msra.mxu0 0.0
        %985 = vmatprep.subr.mxu0 0.0
        %986 = vmatpush2.msra.mxu0 0.0
        %987 = vmatprep.subr.mxu0 0.0
        %988 = vmatpush2.msra.mxu0 0.0
        %989 = vmatprep.subr.mxu0 0.0
        %990 = vmatpush2.msra.mxu0 0.0
        %991 = vmatprep.subr.mxu0 0.0
        %992 = vmatpush2.msra.mxu0 0.0
        %993 = vmatprep.subr.mxu0 0.0
        %994 = vmatpush2.msra.mxu0 0.0
        %995 = vmatprep.subr.mxu0 0.0
        %996 = vmatpush2.msra.mxu0 0.0
        %997 = vmatprep.subr.mxu0 0.0
        %998 = vmatpush2.msra.mxu0 0.0
        %999 = vmatprep.subr.mxu0 0.0
        %1000 = vmatpush2.msra.mxu0 0.0
        %1001 = vmatprep.subr.mxu0 0.0
        %1002 = vmatpush2.msra.mxu0 0.0
        %1003 = vmatprep.subr.mxu0 0.0
        %1004 = vmatpush2.msra.mxu0 0.0
        %1005 = vmatprep.subr.mxu0 0.0
        %1006 = vmatpush2.msra.mxu0 0.0
        %1007 = vmatprep.subr.mxu0 0.0
        %1008 = vmatpush2.msra.mxu0 0.0
        %1009 = vmatprep.subr.mxu0 0.0
        %1010 = vmatpush2.msra.mxu0 0.0
        %1011 = vmatprep.subr.mxu0 0.0
        %1012 = vmatpush2.msra.mxu0 0.0
        %1013 = vmatprep.mubr.f32.mxu0 0.0
        %1014 = vmatmul.mubr.f32.gmra.mxu0 %v867
        %v1015 = vpop.f32.mrf.mxu0
        %v1016 = vadd.f32 %v484, %v1015
        %v1017 = vpop.f32.mrf.mxu0
        %1018 = vdwg.mxu0
        %v1019 = vadd.f32 %v877, %v945
        %v1020 = vxor.u32 %v1019, 2147483648
        %v1021 = vmul.f32 %v1020, 1.442695
        %v1022 = vpow.pop %v1021
        %v1023 = vadd.f32 %v1022, 1.0
        %v1024 = vrcp.pop %v1023
        %v1025 = vmul.f32 1.0, %v1024
        %v1027 = vrot.slane %v877, 2
        %v1029 = vadd.f32 %v1027, %v947
        %v1030 = vxor.u32 %v1029, 2147483648
        %v1031 = vmul.f32 %v1030, 1.442695
        %v1032 = vpow.pop %v1031
        %v1033 = vadd.f32 %v1032, 1.0
        %v1034 = vrcp.pop %v1033
        %v1035 = vmul.f32 1.0, %v1034
        %v1036 = vmul.f32 %v1025, %v1016
        %v1037 = vrot.slane %v877, 4
        %v1039 = vadd.f32 %v1037, %v1036
        %v1040 = vtanh.pop %v1039
        %v1041 = vsub.f32 1.0, %v1035
        %v1042 = vmul.f32 %v1041, %v1040
        %v1043 = vmul.f32 %v1035, %v867
        %v1044 = vadd.f32 %v1042, %v1043
        %v1045 = vstv %s873
        %vm1046 = vcmp.gt.s32.totalorder %v410, %v1045
        %v1047 = vsel %vm1046, 1, 0
        %v1048 = vcvt.s32.f32 %v1047
        %1050 = vset.pattern.permute.xlu0 0
        %1051 = vperm.xlu0 %1050, %v1048
        %v1052 = vpop.permute.xlu0 %1051
        %v1054 = vmul.f32 %v1052, %v1044
        %v1055 = vsub.f32 1.0, %v1048
        %1057 = vset.pattern.permute.xlu0 0
        %1058 = vperm.xlu0 %1057, %v1055
        %v1059 = vpop.permute.xlu0 %1058
        %v1061 = vmul.f32 %v1059, %v867
        %v1062 = vadd.f32 %v1054, %v1061
        %v1063 = vmul.f32 %v1052, %v1062
        %s1064 = smul.u32 %s872, 2
        %s1065 = scalar_lea.vmem %s378, %s1064 [#allocation8]
        %1066 = vst [vmem:[%s1065] sm:$0x3] %v1063
        %s1067 = smul.u32 %s34, 4294967293
        %s1068 = sadd.s32 %s1067, 3
        %s1069 = sadd.s32 %s466, %s1068
        %s1070 = smul.u32 %s1068, 3
        %s1071 = smul.addr %s1070, 2
        %s1072 = scalar_lea.vmem %s330, %s1071 [#allocation3]
        %v1073 = vld [vmem:[%s1072] sm:$0x3f]
        %1074 = vmatprep.subr.mxu0 %v457
        %1075 = vmatpush1.msra.mxu0 %v456
        %1076 = vmatprep.subr.mxu0 %v454
        %1077 = vmatpush1.msra.mxu0 %v453
        %1078 = vmatprep.subr.mxu0 %v451
        %1079 = vmatpush1.msra.mxu0 %v450
        %1080 = vmatprep.subr.mxu0 %v448
        %1081 = vmatpush1.msra.mxu0 %v447
        %1082 = vmatprep.subr.mxu0 %v445
        %1083 = vmatpush1.msra.mxu0 %v444
        %1084 = vmatprep.subr.mxu0 %v442
        %1085 = vmatpush1.msra.mxu0 %v441
        %1086 = vmatprep.subr.mxu0 %v439
        %1087 = vmatpush1.msra.mxu0 %v438
        %1088 = vmatprep.subr.mxu0 %v436
        %1089 = vmatpush1.msra.mxu0 %v435
        %1090 = vmatprep.subr.mxu0 %v433
        %1091 = vmatpush1.msra.mxu0 %v432
        %1092 = vmatprep.subr.mxu0 %v430
        %1093 = vmatpush1.msra.mxu0 %v429
        %1094 = vmatprep.subr.mxu0 %v427
        %1095 = vmatpush1.msra.mxu0 %v426
        %1096 = vmatprep.subr.mxu0 %v424
        %1097 = vmatpush1.msra.mxu0 %v423
        %1098 = vmatprep.subr.mxu0 %v421
        %1099 = vmatpush1.msra.mxu0 %v420
        %1100 = vmatprep.subr.mxu0 %v418
        %1101 = vmatpush1.msra.mxu0 %v417
        %1102 = vmatprep.subr.mxu0 %v415
        %1103 = vmatpush1.msra.mxu0 %v414
        %1104 = vmatprep.subr.mxu0 %v412
        %1105 = vmatpush1.msra.mxu0 %v411
        %1106 = vmatprep.subr.mxu0 0.0
        %1107 = vmatpush2.msra.mxu0 0.0
        %1108 = vmatprep.subr.mxu0 0.0
        %1109 = vmatpush2.msra.mxu0 0.0
        %1110 = vmatprep.subr.mxu0 0.0
        %1111 = vmatpush2.msra.mxu0 0.0
        %1112 = vmatprep.subr.mxu0 0.0
        %1113 = vmatpush2.msra.mxu0 0.0
        %1114 = vmatprep.subr.mxu0 0.0
        %1115 = vmatpush2.msra.mxu0 0.0
        %1116 = vmatprep.subr.mxu0 0.0
        %1117 = vmatpush2.msra.mxu0 0.0
        %1118 = vmatprep.subr.mxu0 0.0
        %1119 = vmatpush2.msra.mxu0 0.0
        %1120 = vmatprep.subr.mxu0 0.0
        %1121 = vmatpush2.msra.mxu0 0.0
        %1122 = vmatprep.subr.mxu0 0.0
        %1123 = vmatpush2.msra.mxu0 0.0
        %1124 = vmatprep.subr.mxu0 0.0
        %1125 = vmatpush2.msra.mxu0 0.0
        %1126 = vmatprep.subr.mxu0 0.0
        %1127 = vmatpush2.msra.mxu0 0.0
        %1128 = vmatprep.subr.mxu0 0.0
        %1129 = vmatpush2.msra.mxu0 0.0
        %1130 = vmatprep.subr.mxu0 0.0
        %1131 = vmatpush2.msra.mxu0 0.0
        %1132 = vmatprep.subr.mxu0 0.0
        %1133 = vmatpush2.msra.mxu0 0.0
        %1134 = vmatprep.subr.mxu0 0.0
        %1135 = vmatpush2.msra.mxu0 0.0
        %1136 = vmatprep.subr.mxu0 0.0
        %1137 = vmatpush2.msra.mxu0 0.0
        %1138 = vmatprep.mubr.f32.mxu0 0.0
        %1139 = vmatmul.mubr.f32.gmra.mxu0 %v1062
        %v1140 = vpop.f32.mrf.mxu0
        %v1141 = vadd.f32 %v476, %v1140
        %v1142 = vpop.f32.mrf.mxu0
        %v1143 = vadd.f32 %v480, %v1142
        %1144 = vdwg.mxu0
        %1145 = vmatprep.subr.mxu0 0.0
        %1146 = vmatpush1.msra.mxu0 %v458
        %1147 = vmatprep.subr.mxu0 0.0
        %1148 = vmatpush1.msra.mxu0 %v455
        %1149 = vmatprep.subr.mxu0 0.0
        %1150 = vmatpush1.msra.mxu0 %v452
        %1151 = vmatprep.subr.mxu0 0.0
        %1152 = vmatpush1.msra.mxu0 %v449
        %1153 = vmatprep.subr.mxu0 0.0
        %1154 = vmatpush1.msra.mxu0 %v446
        %1155 = vmatprep.subr.mxu0 0.0
        %1156 = vmatpush1.msra.mxu0 %v443
        %1157 = vmatprep.subr.mxu0 0.0
        %1158 = vmatpush1.msra.mxu0 %v440
        %1159 = vmatprep.subr.mxu0 0.0
        %1160 = vmatpush1.msra.mxu0 %v437
        %1161 = vmatprep.subr.mxu0 0.0
        %1162 = vmatpush1.msra.mxu0 %v434
        %1163 = vmatprep.subr.mxu0 0.0
        %1164 = vmatpush1.msra.mxu0 %v431
        %1165 = vmatprep.subr.mxu0 0.0
        %1166 = vmatpush1.msra.mxu0 %v428
        %1167 = vmatprep.subr.mxu0 0.0
        %1168 = vmatpush1.msra.mxu0 %v425
        %1169 = vmatprep.subr.mxu0 0.0
        %1170 = vmatpush1.msra.mxu0 %v422
        %1171 = vmatprep.subr.mxu0 0.0
        %1172 = vmatpush1.msra.mxu0 %v419
        %1173 = vmatprep.subr.mxu0 0.0
        %1174 = vmatpush1.msra.mxu0 %v416
        %1175 = vmatprep.subr.mxu0 0.0
        %1176 = vmatpush1.msra.mxu0 %v413
        %1177 = vmatprep.subr.mxu0 0.0
        %1178 = vmatpush2.msra.mxu0 0.0
        %1179 = vmatprep.subr.mxu0 0.0
        %1180 = vmatpush2.msra.mxu0 0.0
        %1181 = vmatprep.subr.mxu0 0.0
        %1182 = vmatpush2.msra.mxu0 0.0
        %1183 = vmatprep.subr.mxu0 0.0
        %1184 = vmatpush2.msra.mxu0 0.0
        %1185 = vmatprep.subr.mxu0 0.0
        %1186 = vmatpush2.msra.mxu0 0.0
        %1187 = vmatprep.subr.mxu0 0.0
        %1188 = vmatpush2.msra.mxu0 0.0
        %1189 = vmatprep.subr.mxu0 0.0
        %1190 = vmatpush2.msra.mxu0 0.0
        %1191 = vmatprep.subr.mxu0 0.0
        %1192 = vmatpush2.msra.mxu0 0.0
        %1193 = vmatprep.subr.mxu0 0.0
        %1194 = vmatpush2.msra.mxu0 0.0
        %1195 = vmatprep.subr.mxu0 0.0
        %1196 = vmatpush2.msra.mxu0 0.0
        %1197 = vmatprep.subr.mxu0 0.0
        %1198 = vmatpush2.msra.mxu0 0.0
        %1199 = vmatprep.subr.mxu0 0.0
        %1200 = vmatpush2.msra.mxu0 0.0
        %1201 = vmatprep.subr.mxu0 0.0
        %1202 = vmatpush2.msra.mxu0 0.0
        %1203 = vmatprep.subr.mxu0 0.0
        %1204 = vmatpush2.msra.mxu0 0.0
        %1205 = vmatprep.subr.mxu0 0.0
        %1206 = vmatpush2.msra.mxu0 0.0
        %1207 = vmatprep.subr.mxu0 0.0
        %1208 = vmatpush2.msra.mxu0 0.0
        %1209 = vmatprep.mubr.f32.mxu0 0.0
        %1210 = vmatmul.mubr.f32.gmra.mxu0 %v1062
        %v1211 = vpop.f32.mrf.mxu0
        %v1212 = vadd.f32 %v484, %v1211
        %v1213 = vpop.f32.mrf.mxu0
        %1214 = vdwg.mxu0
        %v1215 = vadd.f32 %v1073, %v1141
        %v1216 = vxor.u32 %v1215, 2147483648
        %v1217 = vmul.f32 %v1216, 1.442695
        %v1218 = vpow.pop %v1217
        %v1219 = vadd.f32 %v1218, 1.0
        %v1220 = vrcp.pop %v1219
        %v1221 = vmul.f32 1.0, %v1220
        %v1223 = vrot.slane %v1073, 2
        %v1225 = vadd.f32 %v1223, %v1143
        %v1226 = vxor.u32 %v1225, 2147483648
        %v1227 = vmul.f32 %v1226, 1.442695
        %v1228 = vpow.pop %v1227
        %v1229 = vadd.f32 %v1228, 1.0
        %v1230 = vrcp.pop %v1229
        %v1231 = vmul.f32 1.0, %v1230
        %v1232 = vmul.f32 %v1221, %v1212
        %v1233 = vrot.slane %v1073, 4
        %v1235 = vadd.f32 %v1233, %v1232
        %v1236 = vtanh.pop %v1235
        %v1237 = vsub.f32 1.0, %v1231
        %v1238 = vmul.f32 %v1237, %v1236
        %v1239 = vmul.f32 %v1231, %v1062
        %v1240 = vadd.f32 %v1238, %v1239
        %v1241 = vstv %s1069
        %vm1242 = vcmp.gt.s32.totalorder %v410, %v1241
        %v1243 = vsel %vm1242, 1, 0
        %v1244 = vcvt.s32.f32 %v1243
        %1246 = vset.pattern.permute.xlu0 0
        %1247 = vperm.xlu0 %1246, %v1244
        %v1248 = vpop.permute.xlu0 %1247
        %v1250 = vmul.f32 %v1248, %v1240
        %v1251 = vsub.f32 1.0, %v1244
        %1253 = vset.pattern.permute.xlu0 0
        %1254 = vperm.xlu0 %1253, %v1251
        %v1255 = vpop.permute.xlu0 %1254
        %v1257 = vmul.f32 %v1255, %v1062
        %v1258 = vadd.f32 %v1250, %v1257
        %v1259 = vmul.f32 %v1248, %v1258
        %s1260 = smul.u32 %s1068, 2
        %s1261 = scalar_lea.vmem %s378, %s1260 [#allocation8]
        %1262 = vst [vmem:[%s1261] sm:$0x3] %v1259
        %1263 = vst [vmem:[#allocation2] sm:$0x3] %v1258
        %p1264 = scmp.eq.s32.totalorder %s35, 2
        // Predicated region
        $region53: #{tpu_custom_call.1} parent=39 // pred_check
          %p1265 = pneg %p1264
        $region54: #{tpu_custom_call.1} parent=39 // pred_check_branch
          %1267 = sbr.rel (%p1265) target = $region56
        $region55: #{tpu_custom_call.1} parent=39 // pred_region
          %1268 = vst [vmem:[%s385] sm:$0x3] %v1258
        $region56: #{tpu_custom_call.1} parent=39 // pred_fallthru
          _
        %s1269 = sand.u32 %s195, 1
        %s1270 = scalar_lea.sflag [#allocation5], %s1269
        %s1271 = sand.u32 %s195, 1
        %s1272 = smul.addr %s1271, 8
        %s1273 = scalar_lea.vmem [#allocation8], %s1272
        %s1274 = sand.u32 %s221, 1
        %s1275 = scalar_lea.sflag [#allocation10], %s1274
        %s1276 = sand.u32 %s221, 1
        %s1277 = smul.addr %s1276, 2
        %s1278 = scalar_lea.vmem [#allocation9], %s1277
        // Predicated region
        $region57: #{tpu_custom_call.1} parent=39 // pred_check
          %p1279 = pneg %p205
        $region58: #{tpu_custom_call.1} parent=39 // pred_check_branch
          %1281 = sbr.rel (%p1279) target = $region60
        $region59: #{tpu_custom_call.1} parent=39 // pred_region
          %s1282 = smul.u32 %s35, 2
          %s1283 = ssub.s32 2, %s1282
          %s1284 = smul.u32 %s34, %s1283
          %s1285 = sadd.s32 %s35, %s1284
          %s1286 = smul.u32 4, %s1285
          %s1288 = ssub.s32 128, 128
          %1289 = vsyncadd %s1270, %s1288
          %s1290 = smul.addr %s34, 12
          %s1291 = sadd.s32 %s1286, %s1290
          %s1292 = smul.addr %s1291, 32
          %s1293 = scalar_lea.hbm %s5, %s1292
          %s1294 = sshll.u32 %s1273, 4
          %s1295 = int_to_ptr.vmem [resolvable:$true] %s1294
          %1300 = dma.vmem_to_hbm [thread:$0]  %s1295, 128, %s1293, %s1270, 32, 32, 2
        $region60: #{tpu_custom_call.1} parent=39 // pred_fallthru
          _
        // Predicated region
        $region61: #{tpu_custom_call.1} parent=39 // pred_check
          %p1301 = pneg %p231
        $region62: #{tpu_custom_call.1} parent=39 // pred_check_branch
          %1303 = sbr.rel (%p1301) target = $region64
        $region63: #{tpu_custom_call.1} parent=39 // pred_region
          %s1305 = ssub.s32 32, 32
          %1306 = vsyncadd %s1275, %s1305
          %s1307 = smul.addr %s34, 32
          %s1308 = scalar_lea.hbm %s6, %s1307
          %s1310 = sshll.u32 %s1278, 4
          %s1311 = int_to_ptr.vmem [resolvable:$true] %s1310
          %1313 = dma.vmem_to_hbm [thread:$0]  %s1311, 32, %s1308, %s1275
        $region64: #{tpu_custom_call.1} parent=39 // pred_fallthru
          _
      $region40: #{tpu_custom_call.1} parent=5 // pred_fallthru
        _
      %p1314 = scmp.le.s32.totalorder 2, %s25
      // Predicated region
      $region65: #{tpu_custom_call.1} parent=5 // pred_check
        %p1315 = pneg %p1314
      $region66: #{tpu_custom_call.1} parent=5 // pred_check_branch
        %1317 = sbr.rel (%p1315) target = $region68
      $region67: #{tpu_custom_call.1} parent=5 // pred_region
        %s1318 = ssub.s32 %s25, 2
        // Predicated region
        $region69: #{tpu_custom_call.1} parent=67 // pred_check
          %p1319 = pneg %p211
        $region70: #{tpu_custom_call.1} parent=67 // pred_check_branch
          %1321 = sbr.rel (%p1319) target = $region72
        $region71: #{tpu_custom_call.1} parent=67 // pred_region
          %s1322 = sand.u32 %s196, 1
          %s1323 = scalar_lea.sflag [#allocation5], %s1322
          %s1324 = sand.u32 %s196, 1
          %s1325 = smul.addr %s1324, 8
          %s1326 = scalar_lea.vmem [#allocation8], %s1325
          %1327 = dma.done %s1323, 128
        $region72: #{tpu_custom_call.1} parent=67 // pred_fallthru
          _
        // Predicated region
        $region73: #{tpu_custom_call.1} parent=67 // pred_check
          %p1328 = pneg %p237
        $region74: #{tpu_custom_call.1} parent=67 // pred_check_branch
          %1330 = sbr.rel (%p1328) target = $region76
        $region75: #{tpu_custom_call.1} parent=67 // pred_region
          %s1331 = sand.u32 %s222, 1
          %s1332 = scalar_lea.sflag [#allocation10], %s1331
          %s1333 = sand.u32 %s222, 1
          %s1334 = smul.addr %s1333, 2
          %s1335 = scalar_lea.vmem [#allocation9], %s1334
          %1336 = dma.done %s1332, 32
        $region76: #{tpu_custom_call.1} parent=67 // pred_fallthru
          _
      $region68: #{tpu_custom_call.1} parent=5 // pred_fallthru
        _
    $region6: #{tpu_custom_call.1} parent=1 // loop_footer
      %s29 = sadd.s32 1, %s25
    $region7: #{tpu_custom_call.1} parent=1 // loop_footer_branch
      %24 = sbr.rel target = $region3
    $region8: #{tpu_custom_call.1} parent=1 // loop_exit
      _
    %1337 = vsyncpa [#allocation4], 1
    %s1338 = scalar_lea.sflag [#allocation4], 1
    %1339 = vsyncpa %s1338, 1
    %1340 = vsyncpa [#allocation7], 1
    %s1341 = scalar_lea.sflag [#allocation7], 1
    %1342 = vsyncpa %s1341, 1
    %1343 = vsyncpa [#allocation5], 1
    %s1344 = scalar_lea.sflag [#allocation5], 1
    %1345 = vsyncpa %s1344, 1
    %1346 = vsyncpa [#allocation10], 1
    %s1347 = scalar_lea.sflag [#allocation10], 1
    %1348 = vsyncpa %s1347, 1

</llo_original>
